<compile_context>
chip_gen: v5e
topology: v5e:2x2
jax: 0.10.0
libtpu: 0.0.40
codegen_flags: <defaults>
</compile_context>

<pallas_src>
import functools
import math

import jax
import jax.numpy as jnp
from jax import lax
from jax.experimental import pallas as pl
from jax.experimental.pallas import tpu as pltpu


def _cdiv(a, b):
    return (a + b - 1) // b


def _round_up(a, b):
    return _cdiv(a, b) * b


# --------------------------------------------------------------------------------------
# Kernel: one row-block (TM, K) @ (K, C_out) + bias, then LeakyReLU(negative_slope).
# --------------------------------------------------------------------------------------
def _conv_mm_kernel(x_ref, w_ref, b_ref, o_ref, *, negative_slope):
    acc = jnp.dot(x_ref[...], w_ref[...], preferred_element_type=jnp.float32)
    acc = acc + b_ref[...]                               # (1, C_out) broadcast per block
    acc = jnp.where(acc >= 0.0, acc, negative_slope * acc)
    o_ref[...] = acc.astype(o_ref.dtype)


def _vmem_limit_bytes():
    """Generation-aware VMEM limit: ~60% of physical VMEM, capped at 64 MiB.
    v7x (64 MiB per TC) -> ~38 MiB; v5e / v6e (128 MiB) -> 64 MiB."""
    cap = 64 * 1024 * 1024
    try:
        cap = int(getattr(pltpu.get_tpu_info(), "vmem_capacity_bytes", cap))
    except Exception:
        pass
    return max(16 * 1024 * 1024, min(int(cap * 0.6), 64 * 1024 * 1024))


def _pick_block_rows(M, requested, K, c_out, in_bytes, out_bytes, vmem_budget,
                     row_quantum=8):
    """Row-tile size: multiple of the sublane quantum, at least 4 grid steps when
    possible (>= 2 per TensorCore on v7x so each core still overlaps DMA with compute),
    and 2x(x tile) + 2x(out tile) + 1x(weights + bias, single-buffered) fits the
    VMEM budget (which is derived from the same generation-aware vmem limit)."""
    q = row_quantum
    min_steps = 4
    br = min(requested, max(q, _round_up(_cdiv(M, min_steps), q)))
    br = max(q, (br // q) * q)
    fixed = K * c_out * in_bytes + c_out * 4             # single-buffered weight + bias
    per_row = 2 * (K * in_bytes + c_out * out_bytes)     # double-buffered x / out tiles
    while br > q and fixed + br * per_row > vmem_budget:
        br = max(q, ((br // 2) // q) * q)
    return br


def downsample_conv_block(x_nhwc, w_hwio, bias, *, block_rows=2048, compute_dtype=None,
                          out_dtype=None, negative_slope=0.01, safe_mode=False):
    """Conv2d(3x3, stride 2, pad 1) + LeakyReLU on an NHWC tensor via a Pallas matmul."""
    B, H, W, C_in = x_nhwc.shape
    kh, kw, wc_in, C_out = w_hwio.shape
    assert (kh, kw) == (3, 3) and wc_in == C_in
    assert H % 2 == 0 and W % 2 == 0, "module guarantees even spatial dims per stage"
    H_out, W_out = H // 2, W // 2
    if out_dtype is None:
        out_dtype = x_nhwc.dtype

    # ---- im2col (pure layout plumbing; with allow_input_fusion XLA folds this producer
    #      into the pallas_call input DMA instead of materializing (M, 9*C_in) in HBM) --
    xp = jnp.pad(x_nhwc, ((0, 0), (1, 1), (1, 1), (0, 0)))
    cols = [xp[:, ky:ky + 2 * H_out:2, kx:kx + 2 * W_out:2, :]
            for ky in range(3) for kx in range(3)]
    patches = jnp.concatenate(cols, axis=-1)             # (B, Ho, Wo, 9*C_in)
    K = 9 * C_in
    M = B * H_out * W_out
    x2d = patches.reshape(M, K)
    w2d = w_hwio.reshape(K, C_out)                        # (ky,kx,ci) order == im2col

    if compute_dtype is not None:                         # bf16 MXU inputs, f32 accum
        x2d = x2d.astype(compute_dtype)                   # (worthwhile on v5e/v6e/v7x)
        w2d = w2d.astype(compute_dtype)

    in_bytes = x2d.dtype.itemsize
    out_bytes = jnp.dtype(out_dtype).itemsize

    # ---- contraction-dim padding: sublane packing for the compute dtype --------------
    q = 16 if in_bytes == 2 else 8
    K_pad = _round_up(K, q)
    if _round_up(K, 128) - K <= max(q, K // 10):          # full lane alignment if cheap
        K_pad = _round_up(K, 128)

    # ---- lane padding of C_out only when it is (nearly) free --------------------------
    cp = _round_up(C_out, 128)
    if cp == C_out or (C_out >= 128 and (cp - C_out) * 5 <= C_out):
        C_out_p = cp
    else:
        C_out_p = C_out        # small embed_dim: masked vst beats 4x store inflation

    if K_pad != K:
        x2d = jnp.pad(x2d, ((0, 0), (0, K_pad - K)))
        w2d = jnp.pad(w2d, ((0, K_pad - K), (0, 0)))
    if C_out_p != C_out:
        w2d = jnp.pad(w2d, ((0, 0), (0, C_out_p - C_out)))
    b2d = bias.astype(jnp.float32)
    if C_out_p != C_out:
        b2d = jnp.pad(b2d, (0, C_out_p - C_out))
    b2d = b2d.reshape(1, C_out_p)

    # ---- row tiling ------------------------------------------------------------------
    vmem_limit = _vmem_limit_bytes()
    br = _pick_block_rows(M, block_rows, K_pad, C_out_p, in_bytes, out_bytes,
                          vmem_budget=int(vmem_limit * 0.8), row_quantum=q)
    grid_m = _cdiv(M, br)
    M_pad = grid_m * br
    if M_pad != M:             # row tail: pad rows instead of a masked tail block
        x2d = jnp.pad(x2d, ((0, M_pad - M), (0, 0)))

    cost = pl.CostEstimate(
        flops=int(2 * M * K * C_out),
        transcendentals=0,
        bytes_accessed=int(M_pad * K_pad * in_bytes + K_pad * C_out_p * in_bytes
                           + C_out_p * 4 + M_pad * C_out_p * out_bytes),
    )

    # Grid-invariant weight/bias: single-buffer them (constant index_map).
    inv_kwargs = {} if safe_mode else {"pipeline_mode": pl.Buffered(1)}
    in_specs = [
        pl.BlockSpec((br, K_pad), lambda i: (i, 0)),                    # im2col rows
        pl.BlockSpec((K_pad, C_out_p), lambda i: (0, 0), **inv_kwargs),  # full weight
        pl.BlockSpec((1, C_out_p), lambda i: (0, 0), **inv_kwargs),      # bias
    ]

    comp_kwargs = dict(dimension_semantics=("parallel",), vmem_limit_bytes=vmem_limit)
    if not safe_mode:
        # Fuse the im2col producer into the kernel input (no HBM round trip).
        comp_kwargs["allow_input_fusion"] = [True, False, False]

    out2d = pl.pallas_call(
        functools.partial(_conv_mm_kernel, negative_slope=negative_slope),
        out_shape=jax.ShapeDtypeStruct((M_pad, C_out_p), out_dtype),
        grid_spec=pltpu.PrefetchScalarGridSpec(
            num_scalar_prefetch=0,
            grid=(grid_m,),
            in_specs=in_specs,
            out_specs=pl.BlockSpec((br, C_out_p), lambda i: (i, 0)),
        ),
        compiler_params=pltpu.CompilerParams(**comp_kwargs),
        cost_estimate=cost,
    )(x2d, w2d, b2d)

    if M_pad != M:
        out2d = out2d[:M]
    if C_out_p != C_out:
        out2d = out2d[:, :C_out]
    return out2d.reshape(B, H_out, W_out, C_out)


@functools.partial(jax.jit,
                   static_argnames=("block_rows", "compute_dtype", "safe_mode"))
def overlap_patch_embedding(im_nchw, params, *, block_rows=2048, compute_dtype=None,
                            safe_mode=False):
    """im: (B, C, H, W) -> (B, (H/ps)*(W/ps), embed_dim), matching the torch forward."""
    x = jnp.transpose(im_nchw, (0, 2, 3, 1))             # NCHW -> NHWC (channels on lanes)
    final_dtype = im_nchw.dtype
    n_layers = len(params)
    for idx, (w_hwio, b) in enumerate(params):
        last = idx == n_layers - 1
        # Intermediate stages store compute_dtype (e.g. bf16) to halve HBM traffic;
        # the final stage stores the original dtype.
        stage_out = final_dtype if (last or compute_dtype is None) else compute_dtype
        x = downsample_conv_block(x, w_hwio, b, block_rows=block_rows,
                                  compute_dtype=compute_dtype, out_dtype=stage_out,
                                  safe_mode=safe_mode)
    B, Hg, Wg, E = x.shape
    return x.reshape(B, Hg * Wg, E)                       # == flatten(2).transpose(1, 2)


def init_params(key, channels, embed_dim, patch_size):
    """Deterministic params mimicking nn.Conv2d default init; weights in HWIO layout."""
    n_layers = int(math.log2(patch_size))
    dims = [channels] + [embed_dim] * (n_layers - 1)
    params = []
    for i in range(n_layers):
        key, kw_key, kb_key = jax.random.split(key, 3)
        fan_in = dims[i] * 9
        bound = 1.0 / math.sqrt(fan_in)
        w = jax.random.uniform(kw_key, (3, 3, dims[i], embed_dim),
                               minval=-bound, maxval=bound, dtype=jnp.float32)
        b = jax.random.uniform(kb_key, (embed_dim,),
                               minval=-bound, maxval=bound, dtype=jnp.float32)
        params.append((w, b))
    return params


def _reference_forward(im_nchw, params, negative_slope=0.01):
    """Pure-JAX reference mirroring the PyTorch module (strided conv + LeakyReLU)."""
    x = jnp.transpose(im_nchw, (0, 2, 3, 1))
    for w, b in params:
        y = lax.conv_general_dilated(
            x, w, window_strides=(2, 2), padding=((1, 1), (1, 1)),
            dimension_numbers=("NHWC", "HWIO", "NHWC"),
            precision=lax.Precision.HIGHEST)
        y = y + b
        x = jnp.where(y >= 0.0, y, negative_slope * y)
    B, Hg, Wg, E = x.shape
    return x.reshape(B, Hg * Wg, E)


if __name__ == "__main__":
    # Small config consistent with the module: 16x16 image, patch_size=4 (2 conv stages),
    # 3 input channels, embed_dim=32.
    B, C, H, W = 2, 3, 16, 16
    patch_size = 4
    embed_dim = 32

    key = jax.random.PRNGKey(0)
    key, kx = jax.random.split(key)
    im = jax.random.normal(kx, (B, C, H, W), dtype=jnp.float32)
    params = init_params(key, C, embed_dim, patch_size)

    def run(compute_dtype=None):
        try:
            return jax.block_until_ready(
                overlap_patch_embedding(im, params, compute_dtype=compute_dtype))
        except Exception:
            # Feature-detect fallback: drop pl.Buffered(1) single-buffering and
            # allow_input_fusion if this jax/libtpu build rejects them.
            return jax.block_until_ready(
                overlap_patch_embedding(im, params, compute_dtype=compute_dtype,
                                        safe_mode=True))

    ref = _reference_forward(im, params)
    N = (H // patch_size) * (W // patch_size)

    # f32 path (semantics of the torch module; tolerance covers MXU precision modes).
    out = run()
    assert out.shape == (B, N, embed_dim), out.shape
    assert jnp.allclose(out, ref, atol=1e-2, rtol=1e-2), "f32 mismatch vs reference"

    # bf16-input / f32-accumulate path with bf16 intermediate stores (v5e/v6e/v7x).
    # NOTE: casts compound across log2(patch_size) stages, hence the loose tolerance.
    out_bf16 = run(jnp.bfloat16)
    assert out_bf16.shape == (B, N, embed_dim)
    assert jnp.allclose(out_bf16, ref, atol=1e-1, rtol=1e-1), "bf16 mismatch vs reference"

    print("KERNEL_OK")
</pallas_src>

<mosaic_0001>
module attributes {stable_mosaic.version = 11 : i64} {
  func.func @_conv_mm_kernel(%arg0: i32, %arg1: memref<32x32xf32, #tpu.memory_space<vmem>>, %arg2: memref<32x32xf32, #tpu.memory_space<vmem>>, %arg3: memref<1x32xf32, #tpu.memory_space<vmem>>, %arg4: memref<32x32xf32, #tpu.memory_space<vmem>>) attributes {dimension_semantics = [#tpu.dimension_semantics<parallel>], iteration_bounds = array<i64: 4>, scalar_prefetch = 0 : i64, scratch_operands = 0 : i64, tpu.core_type = #tpu.core_type<tc>, window_params = [{transform_indices = @transform_0, window_bounds = array<i64: 32, 32>}, {pipeline_mode = #tpu.pipeline_mode<synchronous>, transform_indices = @transform_1, window_bounds = array<i64: 32, 32>}, {pipeline_mode = #tpu.pipeline_mode<synchronous>, transform_indices = @transform_2, window_bounds = array<i64: 1, 32>}, {transform_indices = @transform_3, window_bounds = array<i64: 32, 32>}]} {
    %c0 = arith.constant 0 : index
    %c0_0 = arith.constant 0 : index
    %0 = vector.load %arg1[%c0, %c0_0] : memref<32x32xf32, #tpu.memory_space<vmem>>, vector<32x32xf32>
    %c0_1 = arith.constant 0 : index
    %c0_2 = arith.constant 0 : index
    %1 = vector.load %arg2[%c0_1, %c0_2] : memref<32x32xf32, #tpu.memory_space<vmem>>, vector<32x32xf32>
    %cst = arith.constant dense<0.000000e+00> : vector<32x32xf32>
    %2 = tpu.matmul %0, %1, %cst {dimension_numbers = #tpu.dot_dimension_numbers<[1], [0], [0], [1], [0, 0, 1, 1], [], []>} : vector<32x32xf32>, vector<32x32xf32>, vector<32x32xf32> -> vector<32x32xf32>
    %c0_3 = arith.constant 0 : index
    %c0_4 = arith.constant 0 : index
    %3 = vector.load %arg3[%c0_3, %c0_4] : memref<1x32xf32, #tpu.memory_space<vmem>>, vector<1x32xf32>
    %4 = vector.broadcast %3 : vector<1x32xf32> to vector<32x32xf32>
    %5 = arith.addf %2, %4 : vector<32x32xf32>
    %cst_5 = arith.constant 0.000000e+00 : f32
    %6 = vector.broadcast %cst_5 : f32 to vector<32x32xf32>
    %7 = arith.cmpf oge, %5, %6 : vector<32x32xf32>
    %cst_6 = arith.constant 0.00999999977 : f32
    %8 = vector.broadcast %cst_6 : f32 to vector<32x32xf32>
    %9 = arith.mulf %8, %5 : vector<32x32xf32>
    %10 = arith.select %7, %5, %9 : vector<32x32xi1>, vector<32x32xf32>
    %c0_7 = arith.constant 0 : index
    %c0_8 = arith.constant 0 : index
    %11 = vector.load %arg4[%c0_7, %c0_8] : memref<32x32xf32, #tpu.memory_space<vmem>>, vector<32x32xf32>
    tpu.vector_store %arg4[%c0_7, %c0_8], %10 {strides = array<i32>} : memref<32x32xf32, #tpu.memory_space<vmem>>, vector<32x32xf32>,
    return
  }
  func.func @transform_0(%arg0: i32) -> (i32, i32) {
    %c0_i32 = arith.constant 0 : i32
    %c0_i32_0 = arith.constant 0 : i32
    return %arg0, %c0_i32 : i32, i32
  }
  func.func @transform_1(%arg0: i32) -> (i32, i32) {
    %c0_i32 = arith.constant 0 : i32
    %c0_i32_0 = arith.constant 0 : i32
    %c0_i32_1 = arith.constant 0 : i32
    return %c0_i32, %c0_i32_0 : i32, i32
  }
  func.func @transform_2(%arg0: i32) -> (i32, i32) {
    %c0_i32 = arith.constant 0 : i32
    %c0_i32_0 = arith.constant 0 : i32
    %c0_i32_1 = arith.constant 0 : i32
    return %c0_i32, %c0_i32_0 : i32, i32
  }
  func.func @transform_3(%arg0: i32) -> (i32, i32) {
    %c0_i32 = arith.constant 0 : i32
    %c0_i32_0 = arith.constant 0 : i32
    return %arg0, %c0_i32 : i32, i32
  }
}

module attributes {stable_mosaic.version = 11 : i64} {
  func.func @_conv_mm_kernel(%arg0: i32, %arg1: memref<8x288xf32, #tpu.memory_space<vmem>>, %arg2: memref<288x32xf32, #tpu.memory_space<vmem>>, %arg3: memref<1x32xf32, #tpu.memory_space<vmem>>, %arg4: memref<8x32xf32, #tpu.memory_space<vmem>>) attributes {dimension_semantics = [#tpu.dimension_semantics<parallel>], iteration_bounds = array<i64: 4>, scalar_prefetch = 0 : i64, scratch_operands = 0 : i64, tpu.core_type = #tpu.core_type<tc>, window_params = [{transform_indices = @transform_0, window_bounds = array<i64: 8, 288>}, {pipeline_mode = #tpu.pipeline_mode<synchronous>, transform_indices = @transform_1, window_bounds = array<i64: 288, 32>}, {pipeline_mode = #tpu.pipeline_mode<synchronous>, transform_indices = @transform_2, window_bounds = array<i64: 1, 32>}, {transform_indices = @transform_3, window_bounds = array<i64: 8, 32>}]} {
    %c0 = arith.constant 0 : index
    %c0_0 = arith.constant 0 : index
    %0 = vector.load %arg1[%c0, %c0_0] : memref<8x288xf32, #tpu.memory_space<vmem>>, vector<8x288xf32>
    %c0_1 = arith.constant 0 : index
    %c0_2 = arith.constant 0 : index
    %1 = vector.load %arg2[%c0_1, %c0_2] : memref<288x32xf32, #tpu.memory_space<vmem>>, vector<288x32xf32>
    %cst = arith.constant dense<0.000000e+00> : vector<8x32xf32>
    %2 = tpu.matmul %0, %1, %cst {dimension_numbers = #tpu.dot_dimension_numbers<[1], [0], [0], [1], [0, 0, 1, 1], [], []>} : vector<8x288xf32>, vector<288x32xf32>, vector<8x32xf32> -> vector<8x32xf32>
    %c0_3 = arith.constant 0 : index
    %c0_4 = arith.constant 0 : index
    %3 = vector.load %arg3[%c0_3, %c0_4] : memref<1x32xf32, #tpu.memory_space<vmem>>, vector<1x32xf32>
    %4 = vector.broadcast %3 : vector<1x32xf32> to vector<8x32xf32>
    %5 = arith.addf %2, %4 : vector<8x32xf32>
    %cst_5 = arith.constant 0.000000e+00 : f32
    %6 = vector.broadcast %cst_5 : f32 to vector<8x32xf32>
    %7 = arith.cmpf oge, %5, %6 : vector<8x32xf32>
    %cst_6 = arith.constant 0.00999999977 : f32
    %8 = vector.broadcast %cst_6 : f32 to vector<8x32xf32>
    %9 = arith.mulf %8, %5 : vector<8x32xf32>
    %10 = arith.select %7, %5, %9 : vector<8x32xi1>, vector<8x32xf32>
    %c0_7 = arith.constant 0 : index
    %c0_8 = arith.constant 0 : index
    %11 = vector.load %arg4[%c0_7, %c0_8] : memref<8x32xf32, #tpu.memory_space<vmem>>, vector<8x32xf32>
    tpu.vector_store %arg4[%c0_7, %c0_8], %10 {strides = array<i32>} : memref<8x32xf32, #tpu.memory_space<vmem>>, vector<8x32xf32>,
    return
  }
  func.func @transform_0(%arg0: i32) -> (i32, i32) {
    %c0_i32 = arith.constant 0 : i32
    %c0_i32_0 = arith.constant 0 : i32
    return %arg0, %c0_i32 : i32, i32
  }
  func.func @transform_1(%arg0: i32) -> (i32, i32) {
    %c0_i32 = arith.constant 0 : i32
    %c0_i32_0 = arith.constant 0 : i32
    %c0_i32_1 = arith.constant 0 : i32
    return %c0_i32, %c0_i32_0 : i32, i32
  }
  func.func @transform_2(%arg0: i32) -> (i32, i32) {
    %c0_i32 = arith.constant 0 : i32
    %c0_i32_0 = arith.constant 0 : i32
    %c0_i32_1 = arith.constant 0 : i32
    return %c0_i32, %c0_i32_0 : i32, i32
  }
  func.func @transform_3(%arg0: i32) -> (i32, i32) {
    %c0_i32 = arith.constant 0 : i32
    %c0_i32_0 = arith.constant 0 : i32
    return %arg0, %c0_i32 : i32, i32
  }
}

module attributes {stable_mosaic.version = 11 : i64} {
  func.func @_conv_mm_kernel(%arg0: i32, %arg1: memref<32x32xf32, #tpu.memory_space<vmem>>, %arg2: memref<32x32xf32, #tpu.memory_space<vmem>>, %arg3: memref<1x32xf32, #tpu.memory_space<vmem>>, %arg4: memref<32x32xf32, #tpu.memory_space<vmem>>) attributes {dimension_semantics = [#tpu.dimension_semantics<parallel>], iteration_bounds = array<i64: 4>, scalar_prefetch = 0 : i64, scratch_operands = 0 : i64, tpu.core_type = #tpu.core_type<tc>, window_params = [{transform_indices = @transform_0, window_bounds = array<i64: 32, 32>}, {pipeline_mode = #tpu.pipeline_mode<synchronous>, transform_indices = @transform_1, window_bounds = array<i64: 32, 32>}, {pipeline_mode = #tpu.pipeline_mode<synchronous>, transform_indices = @transform_2, window_bounds = array<i64: 1, 32>}, {transform_indices = @transform_3, window_bounds = array<i64: 32, 32>}]} {
    %c0 = arith.constant 0 : index
    %c0_0 = arith.constant 0 : index
    %0 = vector.load %arg1[%c0, %c0_0] : memref<32x32xf32, #tpu.memory_space<vmem>>, vector<32x32xf32>
    %c0_1 = arith.constant 0 : index
    %c0_2 = arith.constant 0 : index
    %1 = vector.load %arg2[%c0_1, %c0_2] : memref<32x32xf32, #tpu.memory_space<vmem>>, vector<32x32xf32>
    %cst = arith.constant dense<0.000000e+00> : vector<32x32xf32>
    %2 = tpu.matmul %0, %1, %cst {dimension_numbers = #tpu.dot_dimension_numbers<[1], [0], [0], [1], [0, 0, 1, 1], [], []>} : vector<32x32xf32>, vector<32x32xf32>, vector<32x32xf32> -> vector<32x32xf32>
    %c0_3 = arith.constant 0 : index
    %c0_4 = arith.constant 0 : index
    %3 = vector.load %arg3[%c0_3, %c0_4] : memref<1x32xf32, #tpu.memory_space<vmem>>, vector<1x32xf32>
    %4 = vector.broadcast %3 : vector<1x32xf32> to vector<32x32xf32>
    %5 = arith.addf %2, %4 : vector<32x32xf32>
    %cst_5 = arith.constant 0.000000e+00 : f32
    %6 = vector.broadcast %cst_5 : f32 to vector<32x32xf32>
    %7 = arith.cmpf oge, %5, %6 : vector<32x32xf32>
    %cst_6 = arith.constant 0.00999999977 : f32
    %8 = vector.broadcast %cst_6 : f32 to vector<32x32xf32>
    %9 = arith.mulf %8, %5 : vector<32x32xf32>
    %10 = arith.select %7, %5, %9 : vector<32x32xi1>, vector<32x32xf32>
    %c0_7 = arith.constant 0 : index
    %c0_8 = arith.constant 0 : index
    %11 = vector.load %arg4[%c0_7, %c0_8] : memref<32x32xf32, #tpu.memory_space<vmem>>, vector<32x32xf32>
    tpu.vector_store %arg4[%c0_7, %c0_8], %10 {strides = array<i32>} : memref<32x32xf32, #tpu.memory_space<vmem>>, vector<32x32xf32>,
    return
  }
  func.func @transform_0(%arg0: i32) -> (i32, i32) {
    %c0_i32 = arith.constant 0 : i32
    %c0_i32_0 = arith.constant 0 : i32
    return %arg0, %c0_i32 : i32, i32
  }
  func.func @transform_1(%arg0: i32) -> (i32, i32) {
    %c0_i32 = arith.constant 0 : i32
    %c0_i32_0 = arith.constant 0 : i32
    %c0_i32_1 = arith.constant 0 : i32
    return %c0_i32, %c0_i32_0 : i32, i32
  }
  func.func @transform_2(%arg0: i32) -> (i32, i32) {
    %c0_i32 = arith.constant 0 : i32
    %c0_i32_0 = arith.constant 0 : i32
    %c0_i32_1 = arith.constant 0 : i32
    return %c0_i32, %c0_i32_0 : i32, i32
  }
  func.func @transform_3(%arg0: i32) -> (i32, i32) {
    %c0_i32 = arith.constant 0 : i32
    %c0_i32_0 = arith.constant 0 : i32
    return %arg0, %c0_i32 : i32, i32
  }
}

module attributes {stable_mosaic.version = 11 : i64} {
  func.func @_conv_mm_kernel(%arg0: i32, %arg1: memref<8x288xf32, #tpu.memory_space<vmem>>, %arg2: memref<288x32xf32, #tpu.memory_space<vmem>>, %arg3: memref<1x32xf32, #tpu.memory_space<vmem>>, %arg4: memref<8x32xf32, #tpu.memory_space<vmem>>) attributes {dimension_semantics = [#tpu.dimension_semantics<parallel>], iteration_bounds = array<i64: 4>, scalar_prefetch = 0 : i64, scratch_operands = 0 : i64, tpu.core_type = #tpu.core_type<tc>, window_params = [{transform_indices = @transform_0, window_bounds = array<i64: 8, 288>}, {pipeline_mode = #tpu.pipeline_mode<synchronous>, transform_indices = @transform_1, window_bounds = array<i64: 288, 32>}, {pipeline_mode = #tpu.pipeline_mode<synchronous>, transform_indices = @transform_2, window_bounds = array<i64: 1, 32>}, {transform_indices = @transform_3, window_bounds = array<i64: 8, 32>}]} {
    %c0 = arith.constant 0 : index
    %c0_0 = arith.constant 0 : index
    %0 = vector.load %arg1[%c0, %c0_0] : memref<8x288xf32, #tpu.memory_space<vmem>>, vector<8x288xf32>
    %c0_1 = arith.constant 0 : index
    %c0_2 = arith.constant 0 : index
    %1 = vector.load %arg2[%c0_1, %c0_2] : memref<288x32xf32, #tpu.memory_space<vmem>>, vector<288x32xf32>
    %cst = arith.constant dense<0.000000e+00> : vector<8x32xf32>
    %2 = tpu.matmul %0, %1, %cst {dimension_numbers = #tpu.dot_dimension_numbers<[1], [0], [0], [1], [0, 0, 1, 1], [], []>} : vector<8x288xf32>, vector<288x32xf32>, vector<8x32xf32> -> vector<8x32xf32>
    %c0_3 = arith.constant 0 : index
    %c0_4 = arith.constant 0 : index
    %3 = vector.load %arg3[%c0_3, %c0_4] : memref<1x32xf32, #tpu.memory_space<vmem>>, vector<1x32xf32>
    %4 = vector.broadcast %3 : vector<1x32xf32> to vector<8x32xf32>
    %5 = arith.addf %2, %4 : vector<8x32xf32>
    %cst_5 = arith.constant 0.000000e+00 : f32
    %6 = vector.broadcast %cst_5 : f32 to vector<8x32xf32>
    %7 = arith.cmpf oge, %5, %6 : vector<8x32xf32>
    %cst_6 = arith.constant 0.00999999977 : f32
    %8 = vector.broadcast %cst_6 : f32 to vector<8x32xf32>
    %9 = arith.mulf %8, %5 : vector<8x32xf32>
    %10 = arith.select %7, %5, %9 : vector<8x32xi1>, vector<8x32xf32>
    %c0_7 = arith.constant 0 : index
    %c0_8 = arith.constant 0 : index
    %11 = vector.load %arg4[%c0_7, %c0_8] : memref<8x32xf32, #tpu.memory_space<vmem>>, vector<8x32xf32>
    tpu.vector_store %arg4[%c0_7, %c0_8], %10 {strides = array<i32>} : memref<8x32xf32, #tpu.memory_space<vmem>>, vector<8x32xf32>,
    return
  }
  func.func @transform_0(%arg0: i32) -> (i32, i32) {
    %c0_i32 = arith.constant 0 : i32
    %c0_i32_0 = arith.constant 0 : i32
    return %arg0, %c0_i32 : i32, i32
  }
  func.func @transform_1(%arg0: i32) -> (i32, i32) {
    %c0_i32 = arith.constant 0 : i32
    %c0_i32_0 = arith.constant 0 : i32
    %c0_i32_1 = arith.constant 0 : i32
    return %c0_i32, %c0_i32_0 : i32, i32
  }
  func.func @transform_2(%arg0: i32) -> (i32, i32) {
    %c0_i32 = arith.constant 0 : i32
    %c0_i32_0 = arith.constant 0 : i32
    %c0_i32_1 = arith.constant 0 : i32
    return %c0_i32, %c0_i32_0 : i32, i32
  }
  func.func @transform_3(%arg0: i32) -> (i32, i32) {
    %c0_i32 = arith.constant 0 : i32
    %c0_i32_0 = arith.constant 0 : i32
    return %arg0, %c0_i32 : i32, i32
  }
}

</mosaic_0001>

<llo_original>
// kernel: overlap_patch_embedding.4
$region0: #{overlap_patch_embedding.4}
  #allocation0 [shape = 'u32[]', space=smem, size = 0x4, offset = 0x4, fixed_abs, tag = 'smem constant byte address 0x4 - core index']
  #allocation1 [shape = 'u32[72,128]{1,0:T(1,128)}', space=vmem, size = 0x9000, scoped, tag = 'internal scratch']
  #allocation2 [shape = 'u32[2048]{0}', space=vmem, size = 0x2000, scoped, tag = 'scoped memory for overlap_patch_embedding.4']
  #allocation3 [shape = 'u32[2048]{0}', space=vmem, size = 0x2000, scoped, tag = 'scoped memory for overlap_patch_embedding.4']
  #allocation4 [shape = 'u32[2048]{0}', space=vmem, size = 0x2000, scoped, tag = 'scoped memory for overlap_patch_embedding.4']
  #allocation5 [shape = 'u32[2048]{0}', space=vmem, size = 0x2000, scoped, tag = 'scoped memory for overlap_patch_embedding.4']
  #allocation6 [shape = 'u32[2048]{0}', space=vmem, size = 0x2000, scoped, tag = 'scoped memory for overlap_patch_embedding.4']
  %s0 = inlined_call_operand.vmem [shape: f32[32,32], index: 0, kind: input, shape index: {}]
  %s1 = inlined_call_operand.vmem [shape: f32[1,32], index: 1, kind: input, shape index: {}]
  %s2 = inlined_call_operand.vmem [shape: f32[128,27], index: 2, kind: input, shape index: {}]
  %s3 = inlined_call_operand.<no memory space> [shape: f32[], index: 3, kind: input, shape index: {}]
  %s4 = inlined_call_operand.vmem [shape: f32[128,32], index: 4, kind: output, shape index: {}]
  %s5 = sld [smem:[#allocation0]]
  $region45: #{overlap_patch_embedding.4} parent=0
    _
  %s7 = ssub.s32 1, %s5
  %s8 = scalar_select 0, %s7, %s5
  %v9 = vstv %s3
  loop: start=0, step=1, limit=6
  $region2: #{overlap_patch_embedding.4} parent=0 // loop_pre_header
    _
  $region3: #{overlap_patch_embedding.4} parent=0 // loop_header
    %s11 = sphi 0, %s15
    %p12 = scmp.ge.s32.totalorder %s11, 6
    %s21 = sphi 0, %s23
    %s24 = sphi 0, %s21
    %s25 = sphi 0, %s24
    %s41 = sphi 0, %s25
    %s45 = sphi 0, %s45
    %s47 = sphi 0, %s45
    %s48 = sphi 0, %s47
    %s62 = sphi 0, %s48
    %s66 = sphi 0, %s66
    %s68 = sphi 0, %s66
    %s69 = sphi 0, %s68
    %s83 = sphi 0, %s69
    %s89 = sphi 0, %s91
    %s92 = sphi 0, %s89
    %s93 = sphi 0, %s92
    %s109 = sphi 0, %s93
  $region4: #{overlap_patch_embedding.4} parent=0 // loop_header_branch
    %14 = sbr.rel (%p12) target = $region8
  $region5: #{overlap_patch_embedding.4} parent=0 // loop_body
    %s16 = ssub.s32 %s11, 1
    %s17 = ssub.s32 %s11, 2
    %s18 = sadd.s32 %s11, 1
    %s19 = ssub.s32 %s11, %s18
    %p20 = scmp.eq.s32.totalorder %s19, 0
    %s22 = sadd.s32 %s21, 1
    %s23 = scalar_select %p20, %s21, %s22
    %p26 = pneg %p20
    %p27 = scmp.eq.s32.totalorder %s11, 3
    %p28 = por %p26, %p27
    %p29 = scmp.ne.s32.totalorder %s21, %s24
    %p30 = scmp.eq.s32.totalorder %s11, 0
    %p31 = por %p29, %p30
    %p32 = scmp.ne.s32.totalorder %s21, %s24
    %p33 = scmp.eq.s32.totalorder %s16, 3
    %p34 = por %p32, %p33
    %p35 = scmp.ne.s32.totalorder %s24, %s25
    %p36 = scmp.eq.s32.totalorder %s16, 0
    %p37 = por %p35, %p36
    %p38 = scmp.ne.s32.totalorder %s24, %s25
    %p39 = scmp.eq.s32.totalorder %s17, 3
    %p40 = por %p38, %p39
    %p42 = scmp.ne.s32.totalorder %s25, %s41
    %p43 = scmp.eq.s32.totalorder %s17, 0
    %p44 = por %p42, %p43
    %s46 = sadd.s32 %s45, 1
    %p49 = scmp.eq.s32.totalorder %s11, 3
    %p50 = scmp.ne.s32.totalorder %s45, %s47
    %p51 = scmp.eq.s32.totalorder %s11, 0
    %p52 = por %p50, %p51
    %p53 = scmp.ne.s32.totalorder %s45, %s47
    %p54 = scmp.eq.s32.totalorder %s16, 3
    %p55 = por %p53, %p54
    %p56 = scmp.ne.s32.totalorder %s47, %s48
    %p57 = scmp.eq.s32.totalorder %s16, 0
    %p58 = por %p56, %p57
    %p59 = scmp.ne.s32.totalorder %s47, %s48
    %p60 = scmp.eq.s32.totalorder %s17, 3
    %p61 = por %p59, %p60
    %p63 = scmp.ne.s32.totalorder %s48, %s62
    %p64 = scmp.eq.s32.totalorder %s17, 0
    %p65 = por %p63, %p64
    %s67 = sadd.s32 %s66, 1
    %p70 = scmp.eq.s32.totalorder %s11, 3
    %p71 = scmp.ne.s32.totalorder %s66, %s68
    %p72 = scmp.eq.s32.totalorder %s11, 0
    %p73 = por %p71, %p72
    %p74 = scmp.ne.s32.totalorder %s66, %s68
    %p75 = scmp.eq.s32.totalorder %s16, 3
    %p76 = por %p74, %p75
    %p77 = scmp.ne.s32.totalorder %s68, %s69
    %p78 = scmp.eq.s32.totalorder %s16, 0
    %p79 = por %p77, %p78
    %p80 = scmp.ne.s32.totalorder %s68, %s69
    %p81 = scmp.eq.s32.totalorder %s17, 3
    %p82 = por %p80, %p81
    %p84 = scmp.ne.s32.totalorder %s69, %s83
    %p85 = scmp.eq.s32.totalorder %s17, 0
    %p86 = por %p84, %p85
    %s87 = ssub.s32 %s11, %s18
    %p88 = scmp.eq.s32.totalorder %s87, 0
    %s90 = sadd.s32 %s89, 1
    %s91 = scalar_select %p88, %s89, %s90
    %p94 = pneg %p88
    %p95 = scmp.eq.s32.totalorder %s11, 3
    %p96 = por %p94, %p95
    %p97 = scmp.ne.s32.totalorder %s89, %s92
    %p98 = scmp.eq.s32.totalorder %s11, 0
    %p99 = por %p97, %p98
    %p100 = scmp.ne.s32.totalorder %s89, %s92
    %p101 = scmp.eq.s32.totalorder %s16, 3
    %p102 = por %p100, %p101
    %p103 = scmp.ne.s32.totalorder %s92, %s93
    %p104 = scmp.eq.s32.totalorder %s16, 0
    %p105 = por %p103, %p104
    %p106 = scmp.ne.s32.totalorder %s92, %s93
    %p107 = scmp.eq.s32.totalorder %s17, 3
    %p108 = por %p106, %p107
    %p110 = scmp.ne.s32.totalorder %s93, %s109
    %p111 = scmp.eq.s32.totalorder %s17, 0
    %p112 = por %p110, %p111
    %p113 = scmp.le.s32.totalorder 1, %s11
    %p114 = scmp.lt.s32.totalorder %s11, 5
    %p115 = pnand %p113, %p114
    %p116 = pneg %p115
    // Predicated region
    $region9: #{overlap_patch_embedding.4} parent=5 // pred_check
      _
    $region10: #{overlap_patch_embedding.4} parent=5 // pred_check_branch
      %118 = sbr.rel (%p115) target = $region12
    $region11: #{overlap_patch_embedding.4} parent=5 // pred_region
      %s119 = ssub.s32 %s11, 1
      // Predicated region
      $region13: #{overlap_patch_embedding.4} parent=11 // pred_check
        %p120 = pneg %p58
      $region14: #{overlap_patch_embedding.4} parent=11 // pred_check_branch
        %122 = sbr.rel (%p120) target = $region16
      $region15: #{overlap_patch_embedding.4} parent=11 // pred_region
        _
      $region16: #{overlap_patch_embedding.4} parent=11 // pred_fallthru
        _
      // Predicated region
      $region17: #{overlap_patch_embedding.4} parent=11 // pred_check
        %p123 = pneg %p79
      $region18: #{overlap_patch_embedding.4} parent=11 // pred_check_branch
        %125 = sbr.rel (%p123) target = $region20
      $region19: #{overlap_patch_embedding.4} parent=11 // pred_region
        _
      $region20: #{overlap_patch_embedding.4} parent=11 // pred_fallthru
        _
    $region12: #{overlap_patch_embedding.4} parent=5 // pred_fallthru
      _
    %p126 = scmp.lt.s32.totalorder %s11, 4
    // Predicated region
    $region21: #{overlap_patch_embedding.4} parent=5 // pred_check
      %p127 = pneg %p126
    $region22: #{overlap_patch_embedding.4} parent=5 // pred_check_branch
      %129 = sbr.rel (%p127) target = $region24
    $region23: #{overlap_patch_embedding.4} parent=5 // pred_region
      // Predicated region
      $region25: #{overlap_patch_embedding.4} parent=23 // pred_check
        %p130 = pneg %p31
      $region26: #{overlap_patch_embedding.4} parent=23 // pred_check_branch
        %132 = sbr.rel (%p130) target = $region28
      $region27: #{overlap_patch_embedding.4} parent=23 // pred_region
        %s133 = smul.u32 4, %s11
        %p134 = scmp.lt.s32.totalorder %s133, 15
        %s135 = scalar_select %p134, %s133, 15
        %s136 = smul.addr %s135, 8
        %s137 = scalar_lea.vmem %s2, %s136
        %s138 = smul.u32 4, %s11
      $region28: #{overlap_patch_embedding.4} parent=23 // pred_fallthru
        _
    $region24: #{overlap_patch_embedding.4} parent=5 // pred_fallthru
      _
    %p139 = scmp.le.s32.totalorder 1, %s11
    %p140 = scmp.lt.s32.totalorder %s11, 5
    %p141 = pnand %p139, %p140
    %p142 = pneg %p141
    // Predicated region
    $region29: #{overlap_patch_embedding.4} parent=5 // pred_check
      _
    $region30: #{overlap_patch_embedding.4} parent=5 // pred_check_branch
      %144 = sbr.rel (%p141) target = $region32
    $region31: #{overlap_patch_embedding.4} parent=5 // pred_region
      #allocation7 [shape = 'u8[16384]{0}', space=vmem, size = 0x4000, dematerialized = true, scoped, tag = 'FusionAdapter Buffer %fusion.1 = f32[128,32]{1,0:T(8,128)} fusion(%param_2.1, %param_3), kind=kLoop, calls=%fused_computation.1.clone, metadata={op_name="jit(overlap_patch_embedding)/jit(_pad)/pad" stack_frame_id=16}']
      %s145 = ssub.s32 %s11, 1
      %s146 = smul.u32 4, %s16
      %p147 = scmp.lt.s32.totalorder %s146, 15
      %s148 = scalar_select %p147, %s146, 15
      %s149 = smul.addr %s148, 8
      %s150 = scalar_lea.vmem %s2, %s149
      %p151 = pneg %p37
      %p152 = pneg %p34
      %p153 = pneg %p58
      %p154 = pneg %p55
      %p155 = pneg %p79
      %p156 = pneg %p76
      %p157 = pneg %p105
      %p158 = pneg %p102
      %s159 = smul.u32 4, %s16
      %p160 = scmp.lt.s32.totalorder %s159, 15
      %s161 = scalar_select %p160, %s159, 15
      %s162 = smul.addr %s161, 8
      %s163 = scalar_lea.vmem %s4, %s162
      %s164 = smul.u32 4, %s16
      %p165 = scmp.lt.s32.totalorder %s164, 15
      %s166 = scalar_select %p165, %s164, 15
      %s167 = smul.addr %s166, 8
      %s168 = scalar_lea.vmem %s2, %s167
      %s169 = smul.u32 4, %s16
      %s170 = smul.u32 4, %s16
      %p171 = scmp.lt.s32.totalorder %s170, 15
      %s172 = scalar_select %p171, %s170, 15
      %s173 = smul.addr %s172, 8
      %s174 = scalar_lea.vmem %s4, %s173
      %s175 = smul.u32 4, %s16
      %v176 = vld [vmem:[%s168] sm:$0xff]
      %v177 = vlaneseq
      %v178 = vand.u32 %v177, 127
      %vm180 = vcmp.lt.s32.totalorder %v178, 27
      %v181 = vsel %vm180, %v176, %v9
      %s183 = ssub.s32 256, 1
      %184 = vst [vmem:[#allocation7] sm:%s183] %v181
      %s185 = scalar_lea.vmem %s168, 8
      %v186 = vld [vmem:[%s185] sm:$0xff]
      %v187 = vlaneseq
      %v188 = vand.u32 %v187, 127
      %vm190 = vcmp.lt.s32.totalorder %v188, 27
      %v191 = vsel %vm190, %v186, %v9
      %s192 = scalar_lea.vmem [#allocation7], 8
      %s194 = ssub.s32 256, 1
      %195 = vst [vmem:[%s192] sm:%s194] %v191
      %s196 = scalar_lea.vmem %s168, 16
      %v197 = vld [vmem:[%s196] sm:$0xff]
      %v198 = vlaneseq
      %v199 = vand.u32 %v198, 127
      %vm201 = vcmp.lt.s32.totalorder %v199, 27
      %v202 = vsel %vm201, %v197, %v9
      %s203 = scalar_lea.vmem [#allocation7], 16
      %s205 = ssub.s32 256, 1
      %206 = vst [vmem:[%s203] sm:%s205] %v202
      %s207 = scalar_lea.vmem %s168, 24
      %v208 = vld [vmem:[%s207] sm:$0xff]
      %v209 = vlaneseq
      %v210 = vand.u32 %v209, 127
      %vm212 = vcmp.lt.s32.totalorder %v210, 27
      %v213 = vsel %vm212, %v208, %v9
      %s214 = scalar_lea.vmem [#allocation7], 24
      %s216 = ssub.s32 256, 1
      %217 = vst [vmem:[%s214] sm:%s216] %v213
      %v218 = vld [vmem:[#allocation7] sm:$0xff]
      %v219 = vld [vmem:[#allocation7 + $0x8] sm:$0xff]
      %v220 = vld [vmem:[#allocation7 + $0x10] sm:$0xff]
      %v221 = vld [vmem:[#allocation7 + $0x18] sm:$0xff]
      %v222 = vld [vmem:[%s0] sm:$0xff]
      %v223 = vld [vmem:[%s0 + $0x8] sm:$0xff]
      %v224 = vld [vmem:[%s0 + $0x10] sm:$0xff]
      %v225 = vld [vmem:[%s0 + $0x18] sm:$0xff]
      %v226 = vld [vmem:[%s1] sm:$0x1]
      %v228 = vperm.slane %v226, 0
      %vm230 = vcmask 261120
      %v232 = vsel %vm230, %v218, 0
      %v235 = vsel %vm230, %v219, 0
      %v238 = vsel %vm230, %v220, 0
      %v241 = vsel %vm230, %v221, 0
      %243 = vmatpush.msra.mxu0 0.0
      %244 = vmatpush.msra.mxu0 0.0
      %245 = vmatpush.msra.mxu0 0.0
      %246 = vmatpush.msra.mxu0 0.0
      %247 = vmatpush.msra.mxu0 0.0
      %248 = vmatpush.msra.mxu0 0.0
      %249 = vmatpush.msra.mxu0 0.0
      %250 = vmatpush.msra.mxu0 0.0
      %251 = vmatpush.msra.mxu0 0.0
      %252 = vmatpush.msra.mxu0 0.0
      %253 = vmatpush.msra.mxu0 0.0
      %254 = vmatpush.msra.mxu0 0.0
      %255 = vmatpush.msra.mxu0 %v225
      %256 = vmatpush.msra.mxu0 %v224
      %257 = vmatpush.msra.mxu0 %v223
      %258 = vmatpush.msra.mxu0 %v222
      %259 = vmatmul.f32.gmra.mxu0 %v232
      %v260 = vpop.f32.mrf.mxu0
      %v261 = vadd.f32 %v228, %v260
      %262 = vmatmul.f32.gmra.mxu0 %v235
      %v263 = vpop.f32.mrf.mxu0
      %v264 = vadd.f32 %v228, %v263
      %265 = vmatmul.f32.gmra.mxu0 %v238
      %v266 = vpop.f32.mrf.mxu0
      %v267 = vadd.f32 %v228, %v266
      %268 = vmatmul.f32.gmra.mxu0 %v241
      %v269 = vpop.f32.mrf.mxu0
      %v270 = vadd.f32 %v228, %v269
      %271 = vdwg.mxu0
      %vm272 = vcmp.ge.f32.partialorder %v261, 0.0
      %vm273 = vcmp.ge.f32.partialorder %v264, 0.0
      %vm274 = vcmp.ge.f32.partialorder %v267, 0.0
      %vm275 = vcmp.ge.f32.partialorder %v270, 0.0
      %v276 = vmul.f32 %v261, 0.01
      %v277 = vmul.f32 %v264, 0.01
      %v278 = vmul.f32 %v267, 0.01
      %v279 = vmul.f32 %v270, 0.01
      %v280 = vsel %vm272, %v261, %v276
      %v281 = vsel %vm273, %v264, %v277
      %v282 = vsel %vm274, %v267, %v278
      %v283 = vsel %vm275, %v270, %v279
      %284 = vst.msk [vmem:[%s174] sm:$0xff] %vm230, %v280
      %285 = vst.msk [vmem:[%s174 + $0x8] sm:$0xff] %vm230, %v281
      %286 = vst.msk [vmem:[%s174 + $0x10] sm:$0xff] %vm230, %v282
      %287 = vst.msk [vmem:[%s174 + $0x18] sm:$0xff] %vm230, %v283
      %s288 = smul.u32 4, %s16
      %p289 = scmp.lt.s32.totalorder %s288, 15
      %s290 = scalar_select %p289, %s288, 15
      %s291 = smul.addr %s290, 8
      %s292 = scalar_lea.vmem %s4, %s291
      // Predicated region
      $region33: #{overlap_patch_embedding.4} parent=31 // pred_check
        %p293 = pneg %p102
      $region34: #{overlap_patch_embedding.4} parent=31 // pred_check_branch
        %295 = sbr.rel (%p293) target = $region36
      $region35: #{overlap_patch_embedding.4} parent=31 // pred_region
        %s296 = smul.u32 4, %s16
      $region36: #{overlap_patch_embedding.4} parent=31 // pred_fallthru
        _
    $region32: #{overlap_patch_embedding.4} parent=5 // pred_fallthru
      _
    %p297 = scmp.le.s32.totalorder 2, %s11
    // Predicated region
    $region37: #{overlap_patch_embedding.4} parent=5 // pred_check
      %p298 = pneg %p297
    $region38: #{overlap_patch_embedding.4} parent=5 // pred_check_branch
      %300 = sbr.rel (%p298) target = $region40
    $region39: #{overlap_patch_embedding.4} parent=5 // pred_region
      %s301 = ssub.s32 %s11, 2
      // Predicated region
      $region41: #{overlap_patch_embedding.4} parent=39 // pred_check
        %p302 = pneg %p108
      $region42: #{overlap_patch_embedding.4} parent=39 // pred_check_branch
        %304 = sbr.rel (%p302) target = $region44
      $region43: #{overlap_patch_embedding.4} parent=39 // pred_region
        %s305 = smul.u32 4, %s17
        %p306 = scmp.lt.s32.totalorder %s305, 15
        %s307 = scalar_select %p306, %s305, 15
        %s308 = smul.addr %s307, 8
        %s309 = scalar_lea.vmem %s4, %s308
      $region44: #{overlap_patch_embedding.4} parent=39 // pred_fallthru
        _
    $region40: #{overlap_patch_embedding.4} parent=5 // pred_fallthru
      _
  $region6: #{overlap_patch_embedding.4} parent=0 // loop_footer
    %s15 = sadd.s32 1, %s11
  $region7: #{overlap_patch_embedding.4} parent=0 // loop_footer_branch
    %10 = sbr.rel target = $region3
  $region8: #{overlap_patch_embedding.4} parent=0 // loop_exit
    _

// kernel: overlap_patch_embedding.3
$region0: #{overlap_patch_embedding.3}
  #allocation0 [shape = 'u32[]', space=smem, size = 0x4, offset = 0x4, fixed_abs, tag = 'smem constant byte address 0x4 - core index']
  #allocation1 [shape = 'u32[72,128]{1,0:T(1,128)}', space=vmem, size = 0x9000, scoped, tag = 'internal scratch']
  %s0 = inlined_call_operand.vmem [shape: f32[32,288], index: 0, kind: input, shape index: {}]
  %s1 = inlined_call_operand.vmem [shape: f32[288,32], index: 1, kind: input, shape index: {}]
  %s2 = inlined_call_operand.vmem [shape: f32[1,32], index: 2, kind: input, shape index: {}]
  %s3 = inlined_call_operand.hbm [shape: f32[32,32], index: 3, kind: output, shape index: {}]
  %s4 = sld [smem:[#allocation0]]
  $region45: #{overlap_patch_embedding.3} parent=0
    _
  %s6 = ssub.s32 1, %s4
  %s7 = scalar_select 0, %s6, %s4
  $region1: #{overlap_patch_embedding.3} parent=0
    #allocation2 [shape = 'u8[8192]{0}', space=vmem, size = 0x2000, scoped, tag = 'output window, operand 0']
    #allocation3 [shape = 's32[2]{0}', space=sflag, size = 0x8, scoped, tag = 'scoped memory for overlap_patch_embedding.3']
    %8 = vsyncpa [#allocation3], 0
    %s9 = scalar_lea.sflag [#allocation3], 1
    %10 = vsyncpa %s9, 0
    loop: start=0, step=1, limit=6
    $region2: #{overlap_patch_embedding.3} parent=1 // loop_pre_header
      _
    $region3: #{overlap_patch_embedding.3} parent=1 // loop_header
      %s12 = sphi 0, %s16
      %p13 = scmp.ge.s32.totalorder %s12, 6
      %s22 = sphi 0, %s24
      %s25 = sphi 0, %s22
      %s26 = sphi 0, %s25
      %s42 = sphi 0, %s26
      %s46 = sphi 0, %s46
      %s48 = sphi 0, %s46
      %s49 = sphi 0, %s48
      %s63 = sphi 0, %s49
      %s67 = sphi 0, %s67
      %s69 = sphi 0, %s67
      %s70 = sphi 0, %s69
      %s84 = sphi 0, %s70
      %s90 = sphi 0, %s92
      %s93 = sphi 0, %s90
      %s94 = sphi 0, %s93
      %s110 = sphi 0, %s94
    $region4: #{overlap_patch_embedding.3} parent=1 // loop_header_branch
      %15 = sbr.rel (%p13) target = $region8
    $region5: #{overlap_patch_embedding.3} parent=1 // loop_body
      %s17 = ssub.s32 %s12, 1
      %s18 = ssub.s32 %s12, 2
      %s19 = sadd.s32 %s12, 1
      %s20 = ssub.s32 %s12, %s19
      %p21 = scmp.eq.s32.totalorder %s20, 0
      %s23 = sadd.s32 %s22, 1
      %s24 = scalar_select %p21, %s22, %s23
      %p27 = pneg %p21
      %p28 = scmp.eq.s32.totalorder %s12, 3
      %p29 = por %p27, %p28
      %p30 = scmp.ne.s32.totalorder %s22, %s25
      %p31 = scmp.eq.s32.totalorder %s12, 0
      %p32 = por %p30, %p31
      %p33 = scmp.ne.s32.totalorder %s22, %s25
      %p34 = scmp.eq.s32.totalorder %s17, 3
      %p35 = por %p33, %p34
      %p36 = scmp.ne.s32.totalorder %s25, %s26
      %p37 = scmp.eq.s32.totalorder %s17, 0
      %p38 = por %p36, %p37
      %p39 = scmp.ne.s32.totalorder %s25, %s26
      %p40 = scmp.eq.s32.totalorder %s18, 3
      %p41 = por %p39, %p40
      %p43 = scmp.ne.s32.totalorder %s26, %s42
      %p44 = scmp.eq.s32.totalorder %s18, 0
      %p45 = por %p43, %p44
      %s47 = sadd.s32 %s46, 1
      %p50 = scmp.eq.s32.totalorder %s12, 3
      %p51 = scmp.ne.s32.totalorder %s46, %s48
      %p52 = scmp.eq.s32.totalorder %s12, 0
      %p53 = por %p51, %p52
      %p54 = scmp.ne.s32.totalorder %s46, %s48
      %p55 = scmp.eq.s32.totalorder %s17, 3
      %p56 = por %p54, %p55
      %p57 = scmp.ne.s32.totalorder %s48, %s49
      %p58 = scmp.eq.s32.totalorder %s17, 0
      %p59 = por %p57, %p58
      %p60 = scmp.ne.s32.totalorder %s48, %s49
      %p61 = scmp.eq.s32.totalorder %s18, 3
      %p62 = por %p60, %p61
      %p64 = scmp.ne.s32.totalorder %s49, %s63
      %p65 = scmp.eq.s32.totalorder %s18, 0
      %p66 = por %p64, %p65
      %s68 = sadd.s32 %s67, 1
      %p71 = scmp.eq.s32.totalorder %s12, 3
      %p72 = scmp.ne.s32.totalorder %s67, %s69
      %p73 = scmp.eq.s32.totalorder %s12, 0
      %p74 = por %p72, %p73
      %p75 = scmp.ne.s32.totalorder %s67, %s69
      %p76 = scmp.eq.s32.totalorder %s17, 3
      %p77 = por %p75, %p76
      %p78 = scmp.ne.s32.totalorder %s69, %s70
      %p79 = scmp.eq.s32.totalorder %s17, 0
      %p80 = por %p78, %p79
      %p81 = scmp.ne.s32.totalorder %s69, %s70
      %p82 = scmp.eq.s32.totalorder %s18, 3
      %p83 = por %p81, %p82
      %p85 = scmp.ne.s32.totalorder %s70, %s84
      %p86 = scmp.eq.s32.totalorder %s18, 0
      %p87 = por %p85, %p86
      %s88 = ssub.s32 %s12, %s19
      %p89 = scmp.eq.s32.totalorder %s88, 0
      %s91 = sadd.s32 %s90, 1
      %s92 = scalar_select %p89, %s90, %s91
      %p95 = pneg %p89
      %p96 = scmp.eq.s32.totalorder %s12, 3
      %p97 = por %p95, %p96
      %p98 = scmp.ne.s32.totalorder %s90, %s93
      %p99 = scmp.eq.s32.totalorder %s12, 0
      %p100 = por %p98, %p99
      %p101 = scmp.ne.s32.totalorder %s90, %s93
      %p102 = scmp.eq.s32.totalorder %s17, 3
      %p103 = por %p101, %p102
      %p104 = scmp.ne.s32.totalorder %s93, %s94
      %p105 = scmp.eq.s32.totalorder %s17, 0
      %p106 = por %p104, %p105
      %p107 = scmp.ne.s32.totalorder %s93, %s94
      %p108 = scmp.eq.s32.totalorder %s18, 3
      %p109 = por %p107, %p108
      %p111 = scmp.ne.s32.totalorder %s94, %s110
      %p112 = scmp.eq.s32.totalorder %s18, 0
      %p113 = por %p111, %p112
      %p114 = scmp.le.s32.totalorder 1, %s12
      %p115 = scmp.lt.s32.totalorder %s12, 5
      %p116 = pnand %p114, %p115
      %p117 = pneg %p116
      // Predicated region
      $region9: #{overlap_patch_embedding.3} parent=5 // pred_check
        _
      $region10: #{overlap_patch_embedding.3} parent=5 // pred_check_branch
        %119 = sbr.rel (%p116) target = $region12
      $region11: #{overlap_patch_embedding.3} parent=5 // pred_region
        %s120 = ssub.s32 %s12, 1
        // Predicated region
        $region13: #{overlap_patch_embedding.3} parent=11 // pred_check
          %p121 = pneg %p59
        $region14: #{overlap_patch_embedding.3} parent=11 // pred_check_branch
          %123 = sbr.rel (%p121) target = $region16
        $region15: #{overlap_patch_embedding.3} parent=11 // pred_region
          _
        $region16: #{overlap_patch_embedding.3} parent=11 // pred_fallthru
          _
        // Predicated region
        $region17: #{overlap_patch_embedding.3} parent=11 // pred_check
          %p124 = pneg %p80
        $region18: #{overlap_patch_embedding.3} parent=11 // pred_check_branch
          %126 = sbr.rel (%p124) target = $region20
        $region19: #{overlap_patch_embedding.3} parent=11 // pred_region
          _
        $region20: #{overlap_patch_embedding.3} parent=11 // pred_fallthru
          _
      $region12: #{overlap_patch_embedding.3} parent=5 // pred_fallthru
        _
      %p127 = scmp.lt.s32.totalorder %s12, 4
      // Predicated region
      $region21: #{overlap_patch_embedding.3} parent=5 // pred_check
        %p128 = pneg %p127
      $region22: #{overlap_patch_embedding.3} parent=5 // pred_check_branch
        %130 = sbr.rel (%p128) target = $region24
      $region23: #{overlap_patch_embedding.3} parent=5 // pred_region
        // Predicated region
        $region25: #{overlap_patch_embedding.3} parent=23 // pred_check
          %p131 = pneg %p32
        $region26: #{overlap_patch_embedding.3} parent=23 // pred_check_branch
          %133 = sbr.rel (%p131) target = $region28
        $region27: #{overlap_patch_embedding.3} parent=23 // pred_region
          %p134 = scmp.lt.s32.totalorder %s12, 3
          %s135 = scalar_select %p134, %s12, 3
          %s136 = smul.addr %s135, 3
          %s137 = smul.addr %s136, 8
          %s138 = scalar_lea.vmem %s0, %s137
        $region28: #{overlap_patch_embedding.3} parent=23 // pred_fallthru
          _
      $region24: #{overlap_patch_embedding.3} parent=5 // pred_fallthru
        _
      %p139 = scmp.le.s32.totalorder 1, %s12
      %p140 = scmp.lt.s32.totalorder %s12, 5
      %p141 = pnand %p139, %p140
      %p142 = pneg %p141
      // Predicated region
      $region29: #{overlap_patch_embedding.3} parent=5 // pred_check
        _
      $region30: #{overlap_patch_embedding.3} parent=5 // pred_check_branch
        %144 = sbr.rel (%p141) target = $region32
      $region31: #{overlap_patch_embedding.3} parent=5 // pred_region
        %s145 = ssub.s32 %s12, 1
        %p146 = scmp.lt.s32.totalorder %s17, 3
        %s147 = scalar_select %p146, %s17, 3
        %s148 = smul.addr %s147, 3
        %s149 = smul.addr %s148, 8
        %s150 = scalar_lea.vmem %s0, %s149
        %p151 = pneg %p38
        %p152 = pneg %p35
        %p153 = pneg %p59
        %p154 = pneg %p56
        %p155 = pneg %p80
        %p156 = pneg %p77
        %p157 = pneg %p106
        %p158 = pneg %p103
        %s159 = sand.u32 %s93, 1
        %s160 = scalar_lea.sflag [#allocation3], %s159
        %s161 = sand.u32 %s93, 1
        %s162 = smul.addr %s161, 8
        %s163 = scalar_lea.vmem [#allocation2], %s162
        %p164 = scmp.lt.s32.totalorder %s17, 3
        %s165 = scalar_select %p164, %s17, 3
        %s166 = smul.addr %s165, 3
        %s167 = smul.addr %s166, 8
        %s168 = scalar_lea.vmem %s0, %s167
        %v169 = vld [vmem:[%s168] sm:$0xff]
        %v170 = vld [vmem:[%s168 + $0x8] sm:$0xff]
        %v171 = vld [vmem:[%s168 + $0x10] sm:$0xff]
        %v172 = vld [vmem:[%s1] sm:$0xff]
        %v173 = vld [vmem:[%s1 + $0x8] sm:$0xff]
        %v174 = vld [vmem:[%s1 + $0x10] sm:$0xff]
        %v175 = vld [vmem:[%s1 + $0x18] sm:$0xff]
        %v176 = vld [vmem:[%s1 + $0x20] sm:$0xff]
        %v177 = vld [vmem:[%s1 + $0x28] sm:$0xff]
        %v178 = vld [vmem:[%s1 + $0x30] sm:$0xff]
        %v179 = vld [vmem:[%s1 + $0x38] sm:$0xff]
        %v180 = vld [vmem:[%s1 + $0x40] sm:$0xff]
        %v181 = vld [vmem:[%s1 + $0x48] sm:$0xff]
        %v182 = vld [vmem:[%s1 + $0x50] sm:$0xff]
        %v183 = vld [vmem:[%s1 + $0x58] sm:$0xff]
        %v184 = vld [vmem:[%s1 + $0x60] sm:$0xff]
        %v185 = vld [vmem:[%s1 + $0x68] sm:$0xff]
        %v186 = vld [vmem:[%s1 + $0x70] sm:$0xff]
        %v187 = vld [vmem:[%s1 + $0x78] sm:$0xff]
        %v188 = vld [vmem:[%s1 + $0x80] sm:$0xff]
        %v189 = vld [vmem:[%s1 + $0x88] sm:$0xff]
        %v190 = vld [vmem:[%s1 + $0x90] sm:$0xff]
        %v191 = vld [vmem:[%s1 + $0x98] sm:$0xff]
        %v192 = vld [vmem:[%s1 + $0xa0] sm:$0xff]
        %v193 = vld [vmem:[%s1 + $0xa8] sm:$0xff]
        %v194 = vld [vmem:[%s1 + $0xb0] sm:$0xff]
        %v195 = vld [vmem:[%s1 + $0xb8] sm:$0xff]
        %v196 = vld [vmem:[%s1 + $0xc0] sm:$0xff]
        %v197 = vld [vmem:[%s1 + $0xc8] sm:$0xff]
        %v198 = vld [vmem:[%s1 + $0xd0] sm:$0xff]
        %v199 = vld [vmem:[%s1 + $0xd8] sm:$0xff]
        %v200 = vld [vmem:[%s1 + $0xe0] sm:$0xff]
        %v201 = vld [vmem:[%s1 + $0xe8] sm:$0xff]
        %v202 = vld [vmem:[%s1 + $0xf0] sm:$0xff]
        %v203 = vld [vmem:[%s1 + $0xf8] sm:$0xff]
        %v204 = vld [vmem:[%s1 + $0x100] sm:$0xff]
        %v205 = vld [vmem:[%s1 + $0x108] sm:$0xff]
        %v206 = vld [vmem:[%s1 + $0x110] sm:$0xff]
        %v207 = vld [vmem:[%s1 + $0x118] sm:$0xff]
        %v208 = vld [vmem:[%s2] sm:$0x1]
        %v210 = vperm.slane %v208, 0
        %vm212 = vcmask 261120
        %v214 = vsel %vm212, %v171, 0
        %216 = vmatpush.msra.mxu0 %v187
        %217 = vmatpush.msra.mxu0 %v186
        %218 = vmatpush.msra.mxu0 %v185
        %219 = vmatpush.msra.mxu0 %v184
        %220 = vmatpush.msra.mxu0 %v183
        %221 = vmatpush.msra.mxu0 %v182
        %222 = vmatpush.msra.mxu0 %v181
        %223 = vmatpush.msra.mxu0 %v180
        %224 = vmatpush.msra.mxu0 %v179
        %225 = vmatpush.msra.mxu0 %v178
        %226 = vmatpush.msra.mxu0 %v177
        %227 = vmatpush.msra.mxu0 %v176
        %228 = vmatpush.msra.mxu0 %v175
        %229 = vmatpush.msra.mxu0 %v174
        %230 = vmatpush.msra.mxu0 %v173
        %231 = vmatpush.msra.mxu0 %v172
        %232 = vmatmul.f32.gmra.mxu0 %v169
        %v233 = vpop.f32.mrf.mxu0
        %v234 = vadd.f32 %v210, %v233
        %235 = vdwg.mxu0
        %236 = vmatpush.msra.mxu0 %v203
        %237 = vmatpush.msra.mxu0 %v202
        %238 = vmatpush.msra.mxu0 %v201
        %239 = vmatpush.msra.mxu0 %v200
        %240 = vmatpush.msra.mxu0 %v199
        %241 = vmatpush.msra.mxu0 %v198
        %242 = vmatpush.msra.mxu0 %v197
        %243 = vmatpush.msra.mxu0 %v196
        %244 = vmatpush.msra.mxu0 %v195
        %245 = vmatpush.msra.mxu0 %v194
        %246 = vmatpush.msra.mxu0 %v193
        %247 = vmatpush.msra.mxu0 %v192
        %248 = vmatpush.msra.mxu0 %v191
        %249 = vmatpush.msra.mxu0 %v190
        %250 = vmatpush.msra.mxu0 %v189
        %251 = vmatpush.msra.mxu0 %v188
        %252 = vmatmul.f32.gmra.mxu0 %v170
        %v253 = vpop.f32.mrf.mxu0
        %v254 = vadd.f32 %v234, %v253
        %255 = vdwg.mxu0
        %256 = vmatpush.msra.mxu0 0.0
        %257 = vmatpush.msra.mxu0 0.0
        %258 = vmatpush.msra.mxu0 0.0
        %259 = vmatpush.msra.mxu0 0.0
        %260 = vmatpush.msra.mxu0 0.0
        %261 = vmatpush.msra.mxu0 0.0
        %262 = vmatpush.msra.mxu0 0.0
        %263 = vmatpush.msra.mxu0 0.0
        %264 = vmatpush.msra.mxu0 0.0
        %265 = vmatpush.msra.mxu0 0.0
        %266 = vmatpush.msra.mxu0 0.0
        %267 = vmatpush.msra.mxu0 0.0
        %268 = vmatpush.msra.mxu0 %v207
        %269 = vmatpush.msra.mxu0 %v206
        %270 = vmatpush.msra.mxu0 %v205
        %271 = vmatpush.msra.mxu0 %v204
        %272 = vmatmul.f32.gmra.mxu0 %v214
        %v273 = vpop.f32.mrf.mxu0
        %v274 = vadd.f32 %v254, %v273
        %275 = vdwg.mxu0
        %vm276 = vcmp.ge.f32.partialorder %v274, 0.0
        %v277 = vmul.f32 %v274, 0.01
        %v278 = vsel %vm276, %v274, %v277
        %279 = vst.msk [vmem:[%s163] sm:$0xff] %vm212, %v278
        %s280 = sand.u32 %s93, 1
        %s281 = scalar_lea.sflag [#allocation3], %s280
        %s282 = sand.u32 %s93, 1
        %s283 = smul.addr %s282, 8
        %s284 = scalar_lea.vmem [#allocation2], %s283
        // Predicated region
        $region33: #{overlap_patch_embedding.3} parent=31 // pred_check
          %p285 = pneg %p103
        $region34: #{overlap_patch_embedding.3} parent=31 // pred_check_branch
          %287 = sbr.rel (%p285) target = $region36
        $region35: #{overlap_patch_embedding.3} parent=31 // pred_region
          %289 = vsyncadd %s281, 0
          %s290 = smul.addr %s17, 8
          %s291 = scalar_lea.hbm %s3, %s290
          %s293 = sshll.u32 %s284, 4
          %s294 = int_to_ptr.vmem [resolvable:$true] %s293
          %s295 = sshll.u32 %s291, 4
          %s296 = int_to_ptr.hbm [resolvable:$true] %s295
          %298 = dma.vmem_to_hbm [thread:$0]  %s294, 128, %s296, %s281
        $region36: #{overlap_patch_embedding.3} parent=31 // pred_fallthru
          _
      $region32: #{overlap_patch_embedding.3} parent=5 // pred_fallthru
        _
      %p299 = scmp.le.s32.totalorder 2, %s12
      // Predicated region
      $region37: #{overlap_patch_embedding.3} parent=5 // pred_check
        %p300 = pneg %p299
      $region38: #{overlap_patch_embedding.3} parent=5 // pred_check_branch
        %302 = sbr.rel (%p300) target = $region40
      $region39: #{overlap_patch_embedding.3} parent=5 // pred_region
        %s303 = ssub.s32 %s12, 2
        // Predicated region
        $region41: #{overlap_patch_embedding.3} parent=39 // pred_check
          %p304 = pneg %p109
        $region42: #{overlap_patch_embedding.3} parent=39 // pred_check_branch
          %306 = sbr.rel (%p304) target = $region44
        $region43: #{overlap_patch_embedding.3} parent=39 // pred_region
          %s307 = sand.u32 %s94, 1
          %s308 = scalar_lea.sflag [#allocation3], %s307
          %s309 = sand.u32 %s94, 1
          %s310 = smul.addr %s309, 8
          %s311 = scalar_lea.vmem [#allocation2], %s310
          %313 = dma.done %s308, 128
        $region44: #{overlap_patch_embedding.3} parent=39 // pred_fallthru
          _
      $region40: #{overlap_patch_embedding.3} parent=5 // pred_fallthru
        _
    $region6: #{overlap_patch_embedding.3} parent=1 // loop_footer
      %s16 = sadd.s32 1, %s12
    $region7: #{overlap_patch_embedding.3} parent=1 // loop_footer_branch
      %11 = sbr.rel target = $region3
    $region8: #{overlap_patch_embedding.3} parent=1 // loop_exit
      _
    %314 = vsyncpa [#allocation3], 1
    %s315 = scalar_lea.sflag [#allocation3], 1
    %316 = vsyncpa %s315, 1

// kernel: overlap_patch_embedding.2
$region0: #{overlap_patch_embedding.2}
  #allocation0 [shape = 'u32[]', space=smem, size = 0x4, offset = 0x4, fixed_abs, tag = 'smem constant byte address 0x4 - core index']
  #allocation1 [shape = 'u32[72,128]{1,0:T(1,128)}', space=vmem, size = 0x9000, scoped, tag = 'internal scratch']
  %s0 = inlined_call_operand.vmem [shape: f32[128,32], index: 0, kind: input, shape index: {}]
  %s1 = inlined_call_operand.vmem [shape: f32[32,32], index: 1, kind: input, shape index: {}]
  %s2 = inlined_call_operand.vmem [shape: f32[1,32], index: 2, kind: input, shape index: {}]
  %s3 = inlined_call_operand.vmem [shape: f32[128,32], index: 3, kind: output, shape index: {}]
  %s4 = sld [smem:[#allocation0]]
  $region45: #{overlap_patch_embedding.2} parent=0
    _
  %s6 = ssub.s32 1, %s4
  %s7 = scalar_select 0, %s6, %s4
  loop: start=0, step=1, limit=6
  $region2: #{overlap_patch_embedding.2} parent=0 // loop_pre_header
    _
  $region3: #{overlap_patch_embedding.2} parent=0 // loop_header
    %s9 = sphi 0, %s13
    %p10 = scmp.ge.s32.totalorder %s9, 6
    %s19 = sphi 0, %s21
    %s22 = sphi 0, %s19
    %s23 = sphi 0, %s22
    %s39 = sphi 0, %s23
    %s43 = sphi 0, %s43
    %s45 = sphi 0, %s43
    %s46 = sphi 0, %s45
    %s60 = sphi 0, %s46
    %s64 = sphi 0, %s64
    %s66 = sphi 0, %s64
    %s67 = sphi 0, %s66
    %s81 = sphi 0, %s67
    %s87 = sphi 0, %s89
    %s90 = sphi 0, %s87
    %s91 = sphi 0, %s90
    %s107 = sphi 0, %s91
  $region4: #{overlap_patch_embedding.2} parent=0 // loop_header_branch
    %12 = sbr.rel (%p10) target = $region8
  $region5: #{overlap_patch_embedding.2} parent=0 // loop_body
    %s14 = ssub.s32 %s9, 1
    %s15 = ssub.s32 %s9, 2
    %s16 = sadd.s32 %s9, 1
    %s17 = ssub.s32 %s9, %s16
    %p18 = scmp.eq.s32.totalorder %s17, 0
    %s20 = sadd.s32 %s19, 1
    %s21 = scalar_select %p18, %s19, %s20
    %p24 = pneg %p18
    %p25 = scmp.eq.s32.totalorder %s9, 3
    %p26 = por %p24, %p25
    %p27 = scmp.ne.s32.totalorder %s19, %s22
    %p28 = scmp.eq.s32.totalorder %s9, 0
    %p29 = por %p27, %p28
    %p30 = scmp.ne.s32.totalorder %s19, %s22
    %p31 = scmp.eq.s32.totalorder %s14, 3
    %p32 = por %p30, %p31
    %p33 = scmp.ne.s32.totalorder %s22, %s23
    %p34 = scmp.eq.s32.totalorder %s14, 0
    %p35 = por %p33, %p34
    %p36 = scmp.ne.s32.totalorder %s22, %s23
    %p37 = scmp.eq.s32.totalorder %s15, 3
    %p38 = por %p36, %p37
    %p40 = scmp.ne.s32.totalorder %s23, %s39
    %p41 = scmp.eq.s32.totalorder %s15, 0
    %p42 = por %p40, %p41
    %s44 = sadd.s32 %s43, 1
    %p47 = scmp.eq.s32.totalorder %s9, 3
    %p48 = scmp.ne.s32.totalorder %s43, %s45
    %p49 = scmp.eq.s32.totalorder %s9, 0
    %p50 = por %p48, %p49
    %p51 = scmp.ne.s32.totalorder %s43, %s45
    %p52 = scmp.eq.s32.totalorder %s14, 3
    %p53 = por %p51, %p52
    %p54 = scmp.ne.s32.totalorder %s45, %s46
    %p55 = scmp.eq.s32.totalorder %s14, 0
    %p56 = por %p54, %p55
    %p57 = scmp.ne.s32.totalorder %s45, %s46
    %p58 = scmp.eq.s32.totalorder %s15, 3
    %p59 = por %p57, %p58
    %p61 = scmp.ne.s32.totalorder %s46, %s60
    %p62 = scmp.eq.s32.totalorder %s15, 0
    %p63 = por %p61, %p62
    %s65 = sadd.s32 %s64, 1
    %p68 = scmp.eq.s32.totalorder %s9, 3
    %p69 = scmp.ne.s32.totalorder %s64, %s66
    %p70 = scmp.eq.s32.totalorder %s9, 0
    %p71 = por %p69, %p70
    %p72 = scmp.ne.s32.totalorder %s64, %s66
    %p73 = scmp.eq.s32.totalorder %s14, 3
    %p74 = por %p72, %p73
    %p75 = scmp.ne.s32.totalorder %s66, %s67
    %p76 = scmp.eq.s32.totalorder %s14, 0
    %p77 = por %p75, %p76
    %p78 = scmp.ne.s32.totalorder %s66, %s67
    %p79 = scmp.eq.s32.totalorder %s15, 3
    %p80 = por %p78, %p79
    %p82 = scmp.ne.s32.totalorder %s67, %s81
    %p83 = scmp.eq.s32.totalorder %s15, 0
    %p84 = por %p82, %p83
    %s85 = ssub.s32 %s9, %s16
    %p86 = scmp.eq.s32.totalorder %s85, 0
    %s88 = sadd.s32 %s87, 1
    %s89 = scalar_select %p86, %s87, %s88
    %p92 = pneg %p86
    %p93 = scmp.eq.s32.totalorder %s9, 3
    %p94 = por %p92, %p93
    %p95 = scmp.ne.s32.totalorder %s87, %s90
    %p96 = scmp.eq.s32.totalorder %s9, 0
    %p97 = por %p95, %p96
    %p98 = scmp.ne.s32.totalorder %s87, %s90
    %p99 = scmp.eq.s32.totalorder %s14, 3
    %p100 = por %p98, %p99
    %p101 = scmp.ne.s32.totalorder %s90, %s91
    %p102 = scmp.eq.s32.totalorder %s14, 0
    %p103 = por %p101, %p102
    %p104 = scmp.ne.s32.totalorder %s90, %s91
    %p105 = scmp.eq.s32.totalorder %s15, 3
    %p106 = por %p104, %p105
    %p108 = scmp.ne.s32.totalorder %s91, %s107
    %p109 = scmp.eq.s32.totalorder %s15, 0
    %p110 = por %p108, %p109
    %p111 = scmp.le.s32.totalorder 1, %s9
    %p112 = scmp.lt.s32.totalorder %s9, 5
    %p113 = pnand %p111, %p112
    %p114 = pneg %p113
    // Predicated region
    $region9: #{overlap_patch_embedding.2} parent=5 // pred_check
      _
    $region10: #{overlap_patch_embedding.2} parent=5 // pred_check_branch
      %116 = sbr.rel (%p113) target = $region12
    $region11: #{overlap_patch_embedding.2} parent=5 // pred_region
      %s117 = ssub.s32 %s9, 1
      // Predicated region
      $region13: #{overlap_patch_embedding.2} parent=11 // pred_check
        %p118 = pneg %p56
      $region14: #{overlap_patch_embedding.2} parent=11 // pred_check_branch
        %120 = sbr.rel (%p118) target = $region16
      $region15: #{overlap_patch_embedding.2} parent=11 // pred_region
        _
      $region16: #{overlap_patch_embedding.2} parent=11 // pred_fallthru
        _
      // Predicated region
      $region17: #{overlap_patch_embedding.2} parent=11 // pred_check
        %p121 = pneg %p77
      $region18: #{overlap_patch_embedding.2} parent=11 // pred_check_branch
        %123 = sbr.rel (%p121) target = $region20
      $region19: #{overlap_patch_embedding.2} parent=11 // pred_region
        _
      $region20: #{overlap_patch_embedding.2} parent=11 // pred_fallthru
        _
    $region12: #{overlap_patch_embedding.2} parent=5 // pred_fallthru
      _
    %p124 = scmp.lt.s32.totalorder %s9, 4
    // Predicated region
    $region21: #{overlap_patch_embedding.2} parent=5 // pred_check
      %p125 = pneg %p124
    $region22: #{overlap_patch_embedding.2} parent=5 // pred_check_branch
      %127 = sbr.rel (%p125) target = $region24
    $region23: #{overlap_patch_embedding.2} parent=5 // pred_region
      // Predicated region
      $region25: #{overlap_patch_embedding.2} parent=23 // pred_check
        %p128 = pneg %p29
      $region26: #{overlap_patch_embedding.2} parent=23 // pred_check_branch
        %130 = sbr.rel (%p128) target = $region28
      $region27: #{overlap_patch_embedding.2} parent=23 // pred_region
        %s131 = smul.u32 4, %s9
        %p132 = scmp.lt.s32.totalorder %s131, 15
        %s133 = scalar_select %p132, %s131, 15
        %s134 = smul.addr %s133, 8
        %s135 = scalar_lea.vmem %s0, %s134
        %s136 = smul.u32 4, %s9
      $region28: #{overlap_patch_embedding.2} parent=23 // pred_fallthru
        _
    $region24: #{overlap_patch_embedding.2} parent=5 // pred_fallthru
      _
    %p137 = scmp.le.s32.totalorder 1, %s9
    %p138 = scmp.lt.s32.totalorder %s9, 5
    %p139 = pnand %p137, %p138
    %p140 = pneg %p139
    // Predicated region
    $region29: #{overlap_patch_embedding.2} parent=5 // pred_check
      _
    $region30: #{overlap_patch_embedding.2} parent=5 // pred_check_branch
      %142 = sbr.rel (%p139) target = $region32
    $region31: #{overlap_patch_embedding.2} parent=5 // pred_region
      %s143 = ssub.s32 %s9, 1
      %s144 = smul.u32 4, %s14
      %p145 = scmp.lt.s32.totalorder %s144, 15
      %s146 = scalar_select %p145, %s144, 15
      %s147 = smul.addr %s146, 8
      %s148 = scalar_lea.vmem %s0, %s147
      %p149 = pneg %p35
      %p150 = pneg %p32
      %p151 = pneg %p56
      %p152 = pneg %p53
      %p153 = pneg %p77
      %p154 = pneg %p74
      %p155 = pneg %p103
      %p156 = pneg %p100
      %s157 = smul.u32 4, %s14
      %p158 = scmp.lt.s32.totalorder %s157, 15
      %s159 = scalar_select %p158, %s157, 15
      %s160 = smul.addr %s159, 8
      %s161 = scalar_lea.vmem %s3, %s160
      %s162 = smul.u32 4, %s14
      %p163 = scmp.lt.s32.totalorder %s162, 15
      %s164 = scalar_select %p163, %s162, 15
      %s165 = smul.addr %s164, 8
      %s166 = scalar_lea.vmem %s0, %s165
      %s167 = smul.u32 4, %s14
      %s168 = smul.u32 4, %s14
      %p169 = scmp.lt.s32.totalorder %s168, 15
      %s170 = scalar_select %p169, %s168, 15
      %s171 = smul.addr %s170, 8
      %s172 = scalar_lea.vmem %s3, %s171
      %s173 = smul.u32 4, %s14
      %v174 = vld [vmem:[%s166] sm:$0xff]
      %v175 = vld [vmem:[%s166 + $0x8] sm:$0xff]
      %v176 = vld [vmem:[%s166 + $0x10] sm:$0xff]
      %v177 = vld [vmem:[%s166 + $0x18] sm:$0xff]
      %v178 = vld [vmem:[%s1] sm:$0xff]
      %v179 = vld [vmem:[%s1 + $0x8] sm:$0xff]
      %v180 = vld [vmem:[%s1 + $0x10] sm:$0xff]
      %v181 = vld [vmem:[%s1 + $0x18] sm:$0xff]
      %v182 = vld [vmem:[%s2] sm:$0x1]
      %v184 = vperm.slane %v182, 0
      %vm186 = vcmask 261120
      %v188 = vsel %vm186, %v174, 0
      %v191 = vsel %vm186, %v175, 0
      %v194 = vsel %vm186, %v176, 0
      %v197 = vsel %vm186, %v177, 0
      %199 = vmatpush.msra.mxu0 0.0
      %200 = vmatpush.msra.mxu0 0.0
      %201 = vmatpush.msra.mxu0 0.0
      %202 = vmatpush.msra.mxu0 0.0
      %203 = vmatpush.msra.mxu0 0.0
      %204 = vmatpush.msra.mxu0 0.0
      %205 = vmatpush.msra.mxu0 0.0
      %206 = vmatpush.msra.mxu0 0.0
      %207 = vmatpush.msra.mxu0 0.0
      %208 = vmatpush.msra.mxu0 0.0
      %209 = vmatpush.msra.mxu0 0.0
      %210 = vmatpush.msra.mxu0 0.0
      %211 = vmatpush.msra.mxu0 %v181
      %212 = vmatpush.msra.mxu0 %v180
      %213 = vmatpush.msra.mxu0 %v179
      %214 = vmatpush.msra.mxu0 %v178
      %215 = vmatmul.f32.gmra.mxu0 %v188
      %v216 = vpop.f32.mrf.mxu0
      %v217 = vadd.f32 %v184, %v216
      %218 = vmatmul.f32.gmra.mxu0 %v191
      %v219 = vpop.f32.mrf.mxu0
      %v220 = vadd.f32 %v184, %v219
      %221 = vmatmul.f32.gmra.mxu0 %v194
      %v222 = vpop.f32.mrf.mxu0
      %v223 = vadd.f32 %v184, %v222
      %224 = vmatmul.f32.gmra.mxu0 %v197
      %v225 = vpop.f32.mrf.mxu0
      %v226 = vadd.f32 %v184, %v225
      %227 = vdwg.mxu0
      %vm228 = vcmp.ge.f32.partialorder %v217, 0.0
      %vm229 = vcmp.ge.f32.partialorder %v220, 0.0
      %vm230 = vcmp.ge.f32.partialorder %v223, 0.0
      %vm231 = vcmp.ge.f32.partialorder %v226, 0.0
      %v232 = vmul.f32 %v217, 0.01
      %v233 = vmul.f32 %v220, 0.01
      %v234 = vmul.f32 %v223, 0.01
      %v235 = vmul.f32 %v226, 0.01
      %v236 = vsel %vm228, %v217, %v232
      %v237 = vsel %vm229, %v220, %v233
      %v238 = vsel %vm230, %v223, %v234
      %v239 = vsel %vm231, %v226, %v235
      %240 = vst.msk [vmem:[%s172] sm:$0xff] %vm186, %v236
      %241 = vst.msk [vmem:[%s172 + $0x8] sm:$0xff] %vm186, %v237
      %242 = vst.msk [vmem:[%s172 + $0x10] sm:$0xff] %vm186, %v238
      %243 = vst.msk [vmem:[%s172 + $0x18] sm:$0xff] %vm186, %v239
      %s244 = smul.u32 4, %s14
      %p245 = scmp.lt.s32.totalorder %s244, 15
      %s246 = scalar_select %p245, %s244, 15
      %s247 = smul.addr %s246, 8
      %s248 = scalar_lea.vmem %s3, %s247
      // Predicated region
      $region33: #{overlap_patch_embedding.2} parent=31 // pred_check
        %p249 = pneg %p100
      $region34: #{overlap_patch_embedding.2} parent=31 // pred_check_branch
        %251 = sbr.rel (%p249) target = $region36
      $region35: #{overlap_patch_embedding.2} parent=31 // pred_region
        %s252 = smul.u32 4, %s14
      $region36: #{overlap_patch_embedding.2} parent=31 // pred_fallthru
        _
    $region32: #{overlap_patch_embedding.2} parent=5 // pred_fallthru
      _
    %p253 = scmp.le.s32.totalorder 2, %s9
    // Predicated region
    $region37: #{overlap_patch_embedding.2} parent=5 // pred_check
      %p254 = pneg %p253
    $region38: #{overlap_patch_embedding.2} parent=5 // pred_check_branch
      %256 = sbr.rel (%p254) target = $region40
    $region39: #{overlap_patch_embedding.2} parent=5 // pred_region
      %s257 = ssub.s32 %s9, 2
      // Predicated region
      $region41: #{overlap_patch_embedding.2} parent=39 // pred_check
        %p258 = pneg %p106
      $region42: #{overlap_patch_embedding.2} parent=39 // pred_check_branch
        %260 = sbr.rel (%p258) target = $region44
      $region43: #{overlap_patch_embedding.2} parent=39 // pred_region
        %s261 = smul.u32 4, %s15
        %p262 = scmp.lt.s32.totalorder %s261, 15
        %s263 = scalar_select %p262, %s261, 15
        %s264 = smul.addr %s263, 8
        %s265 = scalar_lea.vmem %s3, %s264
      $region44: #{overlap_patch_embedding.2} parent=39 // pred_fallthru
        _
    $region40: #{overlap_patch_embedding.2} parent=5 // pred_fallthru
      _
  $region6: #{overlap_patch_embedding.2} parent=0 // loop_footer
    %s13 = sadd.s32 1, %s9
  $region7: #{overlap_patch_embedding.2} parent=0 // loop_footer_branch
    %8 = sbr.rel target = $region3
  $region8: #{overlap_patch_embedding.2} parent=0 // loop_exit
    _

// kernel: overlap_patch_embedding.3
$region0: #{overlap_patch_embedding.3}
  #allocation0 [shape = 'u32[]', space=smem, size = 0x4, offset = 0x4, fixed_abs, tag = 'smem constant byte address 0x4 - core index']
  #allocation1 [shape = 'u32[72,128]{1,0:T(1,128)}', space=vmem, size = 0x9000, scoped, tag = 'internal scratch']
  %s0 = inlined_call_operand.vmem [shape: f32[32,288], index: 0, kind: input, shape index: {}]
  %s1 = inlined_call_operand.vmem [shape: f32[288,32], index: 1, kind: input, shape index: {}]
  %s2 = inlined_call_operand.vmem [shape: f32[1,32], index: 2, kind: input, shape index: {}]
  %s3 = inlined_call_operand.hbm [shape: f32[32,32], index: 3, kind: output, shape index: {}]
  %s4 = sld [smem:[#allocation0]]
  $region45: #{overlap_patch_embedding.3} parent=0
    _
  %s6 = ssub.s32 1, %s4
  %s7 = scalar_select 0, %s6, %s4
  $region1: #{overlap_patch_embedding.3} parent=0
    #allocation2 [shape = 'u8[8192]{0}', space=vmem, size = 0x2000, scoped, tag = 'output window, operand 0']
    #allocation3 [shape = 's32[2]{0}', space=sflag, size = 0x8, scoped, tag = 'scoped memory for overlap_patch_embedding.3']
    %8 = vsyncpa [#allocation3], 0
    %s9 = scalar_lea.sflag [#allocation3], 1
    %10 = vsyncpa %s9, 0
    loop: start=0, step=1, limit=6
    $region2: #{overlap_patch_embedding.3} parent=1 // loop_pre_header
      _
    $region3: #{overlap_patch_embedding.3} parent=1 // loop_header
      %s12 = sphi 0, %s16
      %p13 = scmp.ge.s32.totalorder %s12, 6
      %s22 = sphi 0, %s24
      %s25 = sphi 0, %s22
      %s26 = sphi 0, %s25
      %s42 = sphi 0, %s26
      %s46 = sphi 0, %s46
      %s48 = sphi 0, %s46
      %s49 = sphi 0, %s48
      %s63 = sphi 0, %s49
      %s67 = sphi 0, %s67
      %s69 = sphi 0, %s67
      %s70 = sphi 0, %s69
      %s84 = sphi 0, %s70
      %s90 = sphi 0, %s92
      %s93 = sphi 0, %s90
      %s94 = sphi 0, %s93
      %s110 = sphi 0, %s94
    $region4: #{overlap_patch_embedding.3} parent=1 // loop_header_branch
      %15 = sbr.rel (%p13) target = $region8
    $region5: #{overlap_patch_embedding.3} parent=1 // loop_body
      %s17 = ssub.s32 %s12, 1
      %s18 = ssub.s32 %s12, 2
      %s19 = sadd.s32 %s12, 1
      %s20 = ssub.s32 %s12, %s19
      %p21 = scmp.eq.s32.totalorder %s20, 0
      %s23 = sadd.s32 %s22, 1
      %s24 = scalar_select %p21, %s22, %s23
      %p27 = pneg %p21
      %p28 = scmp.eq.s32.totalorder %s12, 3
      %p29 = por %p27, %p28
      %p30 = scmp.ne.s32.totalorder %s22, %s25
      %p31 = scmp.eq.s32.totalorder %s12, 0
      %p32 = por %p30, %p31
      %p33 = scmp.ne.s32.totalorder %s22, %s25
      %p34 = scmp.eq.s32.totalorder %s17, 3
      %p35 = por %p33, %p34
      %p36 = scmp.ne.s32.totalorder %s25, %s26
      %p37 = scmp.eq.s32.totalorder %s17, 0
      %p38 = por %p36, %p37
      %p39 = scmp.ne.s32.totalorder %s25, %s26
      %p40 = scmp.eq.s32.totalorder %s18, 3
      %p41 = por %p39, %p40
      %p43 = scmp.ne.s32.totalorder %s26, %s42
      %p44 = scmp.eq.s32.totalorder %s18, 0
      %p45 = por %p43, %p44
      %s47 = sadd.s32 %s46, 1
      %p50 = scmp.eq.s32.totalorder %s12, 3
      %p51 = scmp.ne.s32.totalorder %s46, %s48
      %p52 = scmp.eq.s32.totalorder %s12, 0
      %p53 = por %p51, %p52
      %p54 = scmp.ne.s32.totalorder %s46, %s48
      %p55 = scmp.eq.s32.totalorder %s17, 3
      %p56 = por %p54, %p55
      %p57 = scmp.ne.s32.totalorder %s48, %s49
      %p58 = scmp.eq.s32.totalorder %s17, 0
      %p59 = por %p57, %p58
      %p60 = scmp.ne.s32.totalorder %s48, %s49
      %p61 = scmp.eq.s32.totalorder %s18, 3
      %p62 = por %p60, %p61
      %p64 = scmp.ne.s32.totalorder %s49, %s63
      %p65 = scmp.eq.s32.totalorder %s18, 0
      %p66 = por %p64, %p65
      %s68 = sadd.s32 %s67, 1
      %p71 = scmp.eq.s32.totalorder %s12, 3
      %p72 = scmp.ne.s32.totalorder %s67, %s69
      %p73 = scmp.eq.s32.totalorder %s12, 0
      %p74 = por %p72, %p73
      %p75 = scmp.ne.s32.totalorder %s67, %s69
      %p76 = scmp.eq.s32.totalorder %s17, 3
      %p77 = por %p75, %p76
      %p78 = scmp.ne.s32.totalorder %s69, %s70
      %p79 = scmp.eq.s32.totalorder %s17, 0
      %p80 = por %p78, %p79
      %p81 = scmp.ne.s32.totalorder %s69, %s70
      %p82 = scmp.eq.s32.totalorder %s18, 3
      %p83 = por %p81, %p82
      %p85 = scmp.ne.s32.totalorder %s70, %s84
      %p86 = scmp.eq.s32.totalorder %s18, 0
      %p87 = por %p85, %p86
      %s88 = ssub.s32 %s12, %s19
      %p89 = scmp.eq.s32.totalorder %s88, 0
      %s91 = sadd.s32 %s90, 1
      %s92 = scalar_select %p89, %s90, %s91
      %p95 = pneg %p89
      %p96 = scmp.eq.s32.totalorder %s12, 3
      %p97 = por %p95, %p96
      %p98 = scmp.ne.s32.totalorder %s90, %s93
      %p99 = scmp.eq.s32.totalorder %s12, 0
      %p100 = por %p98, %p99
      %p101 = scmp.ne.s32.totalorder %s90, %s93
      %p102 = scmp.eq.s32.totalorder %s17, 3
      %p103 = por %p101, %p102
      %p104 = scmp.ne.s32.totalorder %s93, %s94
      %p105 = scmp.eq.s32.totalorder %s17, 0
      %p106 = por %p104, %p105
      %p107 = scmp.ne.s32.totalorder %s93, %s94
      %p108 = scmp.eq.s32.totalorder %s18, 3
      %p109 = por %p107, %p108
      %p111 = scmp.ne.s32.totalorder %s94, %s110
      %p112 = scmp.eq.s32.totalorder %s18, 0
      %p113 = por %p111, %p112
      %p114 = scmp.le.s32.totalorder 1, %s12
      %p115 = scmp.lt.s32.totalorder %s12, 5
      %p116 = pnand %p114, %p115
      %p117 = pneg %p116
      // Predicated region
      $region9: #{overlap_patch_embedding.3} parent=5 // pred_check
        _
      $region10: #{overlap_patch_embedding.3} parent=5 // pred_check_branch
        %119 = sbr.rel (%p116) target = $region12
      $region11: #{overlap_patch_embedding.3} parent=5 // pred_region
        %s120 = ssub.s32 %s12, 1
        // Predicated region
        $region13: #{overlap_patch_embedding.3} parent=11 // pred_check
          %p121 = pneg %p59
        $region14: #{overlap_patch_embedding.3} parent=11 // pred_check_branch
          %123 = sbr.rel (%p121) target = $region16
        $region15: #{overlap_patch_embedding.3} parent=11 // pred_region
          _
        $region16: #{overlap_patch_embedding.3} parent=11 // pred_fallthru
          _
        // Predicated region
        $region17: #{overlap_patch_embedding.3} parent=11 // pred_check
          %p124 = pneg %p80
        $region18: #{overlap_patch_embedding.3} parent=11 // pred_check_branch
          %126 = sbr.rel (%p124) target = $region20
        $region19: #{overlap_patch_embedding.3} parent=11 // pred_region
          _
        $region20: #{overlap_patch_embedding.3} parent=11 // pred_fallthru
          _
      $region12: #{overlap_patch_embedding.3} parent=5 // pred_fallthru
        _
      %p127 = scmp.lt.s32.totalorder %s12, 4
      // Predicated region
      $region21: #{overlap_patch_embedding.3} parent=5 // pred_check
        %p128 = pneg %p127
      $region22: #{overlap_patch_embedding.3} parent=5 // pred_check_branch
        %130 = sbr.rel (%p128) target = $region24
      $region23: #{overlap_patch_embedding.3} parent=5 // pred_region
        // Predicated region
        $region25: #{overlap_patch_embedding.3} parent=23 // pred_check
          %p131 = pneg %p32
        $region26: #{overlap_patch_embedding.3} parent=23 // pred_check_branch
          %133 = sbr.rel (%p131) target = $region28
        $region27: #{overlap_patch_embedding.3} parent=23 // pred_region
          %p134 = scmp.lt.s32.totalorder %s12, 3
          %s135 = scalar_select %p134, %s12, 3
          %s136 = smul.addr %s135, 3
          %s137 = smul.addr %s136, 8
          %s138 = scalar_lea.vmem %s0, %s137
        $region28: #{overlap_patch_embedding.3} parent=23 // pred_fallthru
          _
      $region24: #{overlap_patch_embedding.3} parent=5 // pred_fallthru
        _
      %p139 = scmp.le.s32.totalorder 1, %s12
      %p140 = scmp.lt.s32.totalorder %s12, 5
      %p141 = pnand %p139, %p140
      %p142 = pneg %p141
      // Predicated region
      $region29: #{overlap_patch_embedding.3} parent=5 // pred_check
        _
      $region30: #{overlap_patch_embedding.3} parent=5 // pred_check_branch
        %144 = sbr.rel (%p141) target = $region32
      $region31: #{overlap_patch_embedding.3} parent=5 // pred_region
        %s145 = ssub.s32 %s12, 1
        %p146 = scmp.lt.s32.totalorder %s17, 3
        %s147 = scalar_select %p146, %s17, 3
        %s148 = smul.addr %s147, 3
        %s149 = smul.addr %s148, 8
        %s150 = scalar_lea.vmem %s0, %s149
        %p151 = pneg %p38
        %p152 = pneg %p35
        %p153 = pneg %p59
        %p154 = pneg %p56
        %p155 = pneg %p80
        %p156 = pneg %p77
        %p157 = pneg %p106
        %p158 = pneg %p103
        %s159 = sand.u32 %s93, 1
        %s160 = scalar_lea.sflag [#allocation3], %s159
        %s161 = sand.u32 %s93, 1
        %s162 = smul.addr %s161, 8
        %s163 = scalar_lea.vmem [#allocation2], %s162
        %p164 = scmp.lt.s32.totalorder %s17, 3
        %s165 = scalar_select %p164, %s17, 3
        %s166 = smul.addr %s165, 3
        %s167 = smul.addr %s166, 8
        %s168 = scalar_lea.vmem %s0, %s167
        %v169 = vld [vmem:[%s168] sm:$0xff]
        %v170 = vld [vmem:[%s168 + $0x8] sm:$0xff]
        %v171 = vld [vmem:[%s168 + $0x10] sm:$0xff]
        %v172 = vld [vmem:[%s1] sm:$0xff]
        %v173 = vld [vmem:[%s1 + $0x8] sm:$0xff]
        %v174 = vld [vmem:[%s1 + $0x10] sm:$0xff]
        %v175 = vld [vmem:[%s1 + $0x18] sm:$0xff]
        %v176 = vld [vmem:[%s1 + $0x20] sm:$0xff]
        %v177 = vld [vmem:[%s1 + $0x28] sm:$0xff]
        %v178 = vld [vmem:[%s1 + $0x30] sm:$0xff]
        %v179 = vld [vmem:[%s1 + $0x38] sm:$0xff]
        %v180 = vld [vmem:[%s1 + $0x40] sm:$0xff]
        %v181 = vld [vmem:[%s1 + $0x48] sm:$0xff]
        %v182 = vld [vmem:[%s1 + $0x50] sm:$0xff]
        %v183 = vld [vmem:[%s1 + $0x58] sm:$0xff]
        %v184 = vld [vmem:[%s1 + $0x60] sm:$0xff]
        %v185 = vld [vmem:[%s1 + $0x68] sm:$0xff]
        %v186 = vld [vmem:[%s1 + $0x70] sm:$0xff]
        %v187 = vld [vmem:[%s1 + $0x78] sm:$0xff]
        %v188 = vld [vmem:[%s1 + $0x80] sm:$0xff]
        %v189 = vld [vmem:[%s1 + $0x88] sm:$0xff]
        %v190 = vld [vmem:[%s1 + $0x90] sm:$0xff]
        %v191 = vld [vmem:[%s1 + $0x98] sm:$0xff]
        %v192 = vld [vmem:[%s1 + $0xa0] sm:$0xff]
        %v193 = vld [vmem:[%s1 + $0xa8] sm:$0xff]
        %v194 = vld [vmem:[%s1 + $0xb0] sm:$0xff]
        %v195 = vld [vmem:[%s1 + $0xb8] sm:$0xff]
        %v196 = vld [vmem:[%s1 + $0xc0] sm:$0xff]
        %v197 = vld [vmem:[%s1 + $0xc8] sm:$0xff]
        %v198 = vld [vmem:[%s1 + $0xd0] sm:$0xff]
        %v199 = vld [vmem:[%s1 + $0xd8] sm:$0xff]
        %v200 = vld [vmem:[%s1 + $0xe0] sm:$0xff]
        %v201 = vld [vmem:[%s1 + $0xe8] sm:$0xff]
        %v202 = vld [vmem:[%s1 + $0xf0] sm:$0xff]
        %v203 = vld [vmem:[%s1 + $0xf8] sm:$0xff]
        %v204 = vld [vmem:[%s1 + $0x100] sm:$0xff]
        %v205 = vld [vmem:[%s1 + $0x108] sm:$0xff]
        %v206 = vld [vmem:[%s1 + $0x110] sm:$0xff]
        %v207 = vld [vmem:[%s1 + $0x118] sm:$0xff]
        %v208 = vld [vmem:[%s2] sm:$0x1]
        %v210 = vperm.slane %v208, 0
        %vm212 = vcmask 261120
        %v214 = vsel %vm212, %v171, 0
        %216 = vmatpush.msra.mxu0 %v187
        %217 = vmatpush.msra.mxu0 %v186
        %218 = vmatpush.msra.mxu0 %v185
        %219 = vmatpush.msra.mxu0 %v184
        %220 = vmatpush.msra.mxu0 %v183
        %221 = vmatpush.msra.mxu0 %v182
        %222 = vmatpush.msra.mxu0 %v181
        %223 = vmatpush.msra.mxu0 %v180
        %224 = vmatpush.msra.mxu0 %v179
        %225 = vmatpush.msra.mxu0 %v178
        %226 = vmatpush.msra.mxu0 %v177
        %227 = vmatpush.msra.mxu0 %v176
        %228 = vmatpush.msra.mxu0 %v175
        %229 = vmatpush.msra.mxu0 %v174
        %230 = vmatpush.msra.mxu0 %v173
        %231 = vmatpush.msra.mxu0 %v172
        %232 = vmatmul.f32.gmra.mxu0 %v169
        %v233 = vpop.f32.mrf.mxu0
        %v234 = vadd.f32 %v210, %v233
        %235 = vdwg.mxu0
        %236 = vmatpush.msra.mxu0 %v203
        %237 = vmatpush.msra.mxu0 %v202
        %238 = vmatpush.msra.mxu0 %v201
        %239 = vmatpush.msra.mxu0 %v200
        %240 = vmatpush.msra.mxu0 %v199
        %241 = vmatpush.msra.mxu0 %v198
        %242 = vmatpush.msra.mxu0 %v197
        %243 = vmatpush.msra.mxu0 %v196
        %244 = vmatpush.msra.mxu0 %v195
        %245 = vmatpush.msra.mxu0 %v194
        %246 = vmatpush.msra.mxu0 %v193
        %247 = vmatpush.msra.mxu0 %v192
        %248 = vmatpush.msra.mxu0 %v191
        %249 = vmatpush.msra.mxu0 %v190
        %250 = vmatpush.msra.mxu0 %v189
        %251 = vmatpush.msra.mxu0 %v188
        %252 = vmatmul.f32.gmra.mxu0 %v170
        %v253 = vpop.f32.mrf.mxu0
        %v254 = vadd.f32 %v234, %v253
        %255 = vdwg.mxu0
        %256 = vmatpush.msra.mxu0 0.0
        %257 = vmatpush.msra.mxu0 0.0
        %258 = vmatpush.msra.mxu0 0.0
        %259 = vmatpush.msra.mxu0 0.0
        %260 = vmatpush.msra.mxu0 0.0
        %261 = vmatpush.msra.mxu0 0.0
        %262 = vmatpush.msra.mxu0 0.0
        %263 = vmatpush.msra.mxu0 0.0
        %264 = vmatpush.msra.mxu0 0.0
        %265 = vmatpush.msra.mxu0 0.0
        %266 = vmatpush.msra.mxu0 0.0
        %267 = vmatpush.msra.mxu0 0.0
        %268 = vmatpush.msra.mxu0 %v207
        %269 = vmatpush.msra.mxu0 %v206
        %270 = vmatpush.msra.mxu0 %v205
        %271 = vmatpush.msra.mxu0 %v204
        %272 = vmatmul.f32.gmra.mxu0 %v214
        %v273 = vpop.f32.mrf.mxu0
        %v274 = vadd.f32 %v254, %v273
        %275 = vdwg.mxu0
        %vm276 = vcmp.ge.f32.partialorder %v274, 0.0
        %v277 = vmul.f32 %v274, 0.01
        %v278 = vsel %vm276, %v274, %v277
        %279 = vst.msk [vmem:[%s163] sm:$0xff] %vm212, %v278
        %s280 = sand.u32 %s93, 1
        %s281 = scalar_lea.sflag [#allocation3], %s280
        %s282 = sand.u32 %s93, 1
        %s283 = smul.addr %s282, 8
        %s284 = scalar_lea.vmem [#allocation2], %s283
        // Predicated region
        $region33: #{overlap_patch_embedding.3} parent=31 // pred_check
          %p285 = pneg %p103
        $region34: #{overlap_patch_embedding.3} parent=31 // pred_check_branch
          %287 = sbr.rel (%p285) target = $region36
        $region35: #{overlap_patch_embedding.3} parent=31 // pred_region
          %289 = vsyncadd %s281, 0
          %s290 = smul.addr %s17, 8
          %s291 = scalar_lea.hbm %s3, %s290
          %s293 = sshll.u32 %s284, 4
          %s294 = int_to_ptr.vmem [resolvable:$true] %s293
          %s295 = sshll.u32 %s291, 4
          %s296 = int_to_ptr.hbm [resolvable:$true] %s295
          %298 = dma.vmem_to_hbm [thread:$0]  %s294, 128, %s296, %s281
        $region36: #{overlap_patch_embedding.3} parent=31 // pred_fallthru
          _
      $region32: #{overlap_patch_embedding.3} parent=5 // pred_fallthru
        _
      %p299 = scmp.le.s32.totalorder 2, %s12
      // Predicated region
      $region37: #{overlap_patch_embedding.3} parent=5 // pred_check
        %p300 = pneg %p299
      $region38: #{overlap_patch_embedding.3} parent=5 // pred_check_branch
        %302 = sbr.rel (%p300) target = $region40
      $region39: #{overlap_patch_embedding.3} parent=5 // pred_region
        %s303 = ssub.s32 %s12, 2
        // Predicated region
        $region41: #{overlap_patch_embedding.3} parent=39 // pred_check
          %p304 = pneg %p109
        $region42: #{overlap_patch_embedding.3} parent=39 // pred_check_branch
          %306 = sbr.rel (%p304) target = $region44
        $region43: #{overlap_patch_embedding.3} parent=39 // pred_region
          %s307 = sand.u32 %s94, 1
          %s308 = scalar_lea.sflag [#allocation3], %s307
          %s309 = sand.u32 %s94, 1
          %s310 = smul.addr %s309, 8
          %s311 = scalar_lea.vmem [#allocation2], %s310
          %313 = dma.done %s308, 128
        $region44: #{overlap_patch_embedding.3} parent=39 // pred_fallthru
          _
      $region40: #{overlap_patch_embedding.3} parent=5 // pred_fallthru
        _
    $region6: #{overlap_patch_embedding.3} parent=1 // loop_footer
      %s16 = sadd.s32 1, %s12
    $region7: #{overlap_patch_embedding.3} parent=1 // loop_footer_branch
      %11 = sbr.rel target = $region3
    $region8: #{overlap_patch_embedding.3} parent=1 // loop_exit
      _
    %314 = vsyncpa [#allocation3], 1
    %s315 = scalar_lea.sflag [#allocation3], 1
    %316 = vsyncpa %s315, 1

</llo_original>
